<compile_context>
chip_gen: v6e
topology: v6e:2x2x1
jax: 0.10.0
libtpu: 0.0.40
codegen_flags: <defaults>
</compile_context>

<pallas_src>
import jax
import jax.numpy as jnp
import numpy as np
from jax.experimental import pallas as pl
from jax.experimental.pallas import tpu as pltpu


def _dy_nconv_kernel(x_ref, a_ref, o_ref):
    # x_ref: (CT, V, LT), a_ref: (V, W, LT), o_ref: (CT, W, LT); L is the lane dim.
    ct, v_dim, _ = x_ref.shape
    a = a_ref[...].astype(jnp.float32)                       # (V, W, LT), loaded once
    for c in range(ct):                                      # static unroll (CT <= 8)
        acc = jnp.zeros(o_ref.shape[1:], jnp.float32)        # (W, LT) f32 accumulator
        for v in range(v_dim):                               # static unroll over nodes
            xrow = x_ref[c, v : v + 1, :].astype(jnp.float32)  # (1, LT) row of x
            acc = acc + xrow * a[v]                          # sublane-broadcast FMA
        o_ref[c] = acc.astype(o_ref.dtype)


def _round_up(a, m):
    return (a + m - 1) // m * m


def _vmem_capacity_bytes():
    try:
        info = pltpu.get_tpu_info()
        return int(getattr(info, "vmem_capacity_bytes", 64 << 20))
    except Exception:
        return 64 << 20  # conservative: v7x per-TensorCore VMEM


def dy_nconv_forward(x, A):
    """x: (N, C, V, L), A: (N, V, W, L) -> (N, C, W, L)."""
    N, C, V, L = x.shape
    Na, Va, W, La = A.shape
    assert (N, V, L) == (Na, Va, La), "shape mismatch between x and A"

    # Match jnp.einsum's dtype promotion (review correctness note).
    out_dtype = jnp.promote_types(x.dtype, A.dtype)
    x = x.astype(out_dtype)
    A = A.astype(out_dtype)
    itemsize = jnp.dtype(out_dtype).itemsize

    # ---- tile sizing from a per-generation VMEM budget ----------------------
    vmem_cap = _vmem_capacity_bytes()      # 64 MiB (v7x) / 128 MiB (v5e, v6e)
    target = vmem_cap // 6                 # per-step block budget (x2 when double-buffered)

    def blk_bytes(ct, lt):                 # bytes of one grid step's blocks
        return (ct * V * lt + V * W * lt + ct * W * lt) * itemsize

    # C tile: largest divisor of C up to 8 (bounds the static unroll in the
    # kernel, avoids padding C, and keeps extra grid steps when C is large).
    CT = 1
    for d in range(min(C, 8), 0, -1):
        if C % d == 0:
            CT = d
            break

    # L tile: the whole L when it fits the budget (no padding at all -- the
    # common case for this op); otherwise a budget-sized multiple of 128.
    if L <= 128 or blk_bytes(CT, L) <= target:
        LT, Lp = L, L
    else:
        per_l = max(1, blk_bytes(CT, 1))
        LT = max(128, (target // per_l) // 128 * 128)
        LT = min(LT, _round_up(L, 128))
        Lp = _round_up(L, LT)

    if Lp != L:  # pad only the time axis; padded steps are sliced off below
        x = jnp.pad(x, ((0, 0), (0, 0), (0, 0), (0, Lp - L)))
        A = jnp.pad(A, ((0, 0), (0, 0), (0, 0), (0, Lp - L)))

    grid = (N, C // CT, Lp // LT)

    vmem_limit = int(min(2 * blk_bytes(CT, LT) + (8 << 20), vmem_cap // 2, 96 << 20))

    out = pl.pallas_call(
        _dy_nconv_kernel,
        out_shape=jax.ShapeDtypeStruct((N, C, W, Lp), out_dtype),
        grid=grid,
        in_specs=[
            pl.BlockSpec((None, CT, V, LT), lambda n, ci, li: (n, ci, 0, li)),
            pl.BlockSpec((None, V, W, LT), lambda n, ci, li: (n, 0, 0, li)),
        ],
        out_specs=pl.BlockSpec((None, CT, W, LT), lambda n, ci, li: (n, ci, 0, li)),
        compiler_params=pltpu.CompilerParams(
            dimension_semantics=("parallel", "parallel", "parallel"),
            vmem_limit_bytes=vmem_limit,
        ),
    )(x, A)

    if Lp != L:
        out = out[..., :L]
    return out  # (N, C, W, L), already contiguous


def reference(x, A):
    return jnp.einsum("ncvl,nvwl->ncwl", x, A)


if __name__ == "__main__":
    # Small shapes consistent with the module: batch=2, channels=4,
    # nodes V=W=16, sequence length L=8.
    N, C, V, W, L = 2, 4, 16, 16, 8

    key = jax.random.PRNGKey(0)
    kx, ka = jax.random.split(key)
    x = jax.random.normal(kx, (N, C, V, L), jnp.float32)
    # A plays the role of a dynamic per-time-step adjacency; normalize it just
    # to keep magnitudes realistic -- any values work for correctness.
    A = jax.nn.softmax(jax.random.normal(ka, (N, V, W, L), jnp.float32), axis=2)

    out = jax.block_until_ready(dy_nconv_forward(x, A))

    ref = reference(x, A)
    assert out.shape == (N, C, W, L)
    np.testing.assert_allclose(np.asarray(out), np.asarray(ref),
                               atol=1e-4, rtol=1e-4)

    print("KERNEL_OK")
</pallas_src>

<mosaic_0001>
module attributes {stable_mosaic.version = 11 : i64} {
  func.func @_dy_nconv_kernel(%arg0: i32, %arg1: i32, %arg2: i32, %arg3: memref<1x4x16x8xf32, #tpu.memory_space<vmem>>, %arg4: memref<1x16x16x8xf32, #tpu.memory_space<vmem>>, %arg5: memref<1x4x16x8xf32, #tpu.memory_space<vmem>>) attributes {dimension_semantics = [#tpu.dimension_semantics<parallel>, #tpu.dimension_semantics<parallel>, #tpu.dimension_semantics<parallel>], iteration_bounds = array<i64: 2, 1, 1>, scalar_prefetch = 0 : i64, scratch_operands = 0 : i64, tpu.core_type = #tpu.core_type<tc>, window_params = [{transform_indices = @transform_0, window_bounds = array<i64: 1, 4, 16, 8>}, {transform_indices = @transform_1, window_bounds = array<i64: 1, 16, 16, 8>}, {transform_indices = @transform_2, window_bounds = array<i64: 1, 4, 16, 8>}]} {
    %c0 = arith.constant 0 : index
    %c0_0 = arith.constant 0 : index
    %c0_1 = arith.constant 0 : index
    %c0_2 = arith.constant 0 : index
    %0 = vector.load %arg4[%c0, %c0_0, %c0_1, %c0_2] : memref<1x16x16x8xf32, #tpu.memory_space<vmem>>, vector<1x16x16x8xf32>
    %1 = vector.shape_cast %0 : vector<1x16x16x8xf32> to vector<16x16x8xf32>
    %cst = arith.constant 0.000000e+00 : f32
    %2 = vector.broadcast %cst : f32 to vector<16x8xf32>
    %c0_3 = arith.constant 0 : index
    %c0_4 = arith.constant 0 : index
    %c0_5 = arith.constant 0 : index
    %c0_6 = arith.constant 0 : index
    %3 = vector.load %arg3[%c0_3, %c0_4, %c0_5, %c0_6] : memref<1x4x16x8xf32, #tpu.memory_space<vmem>>, vector<1x1x1x8xf32>
    %4 = vector.shape_cast %3 : vector<1x1x1x8xf32> to vector<1x8xf32>
    %5 = vector.extract_strided_slice %1 {offsets = [0, 0, 0], sizes = [1, 16, 8], strides = [1, 1, 1]} : vector<16x16x8xf32> to vector<1x16x8xf32>
    %6 = vector.shape_cast %5 : vector<1x16x8xf32> to vector<16x8xf32>
    %7 = vector.broadcast %4 : vector<1x8xf32> to vector<16x8xf32>
    %8 = arith.mulf %7, %6 : vector<16x8xf32>
    %9 = arith.addf %2, %8 : vector<16x8xf32>
    %c0_7 = arith.constant 0 : index
    %c0_8 = arith.constant 0 : index
    %c1 = arith.constant 1 : index
    %c0_9 = arith.constant 0 : index
    %10 = vector.load %arg3[%c0_7, %c0_8, %c1, %c0_9] : memref<1x4x16x8xf32, #tpu.memory_space<vmem>>, vector<1x1x1x8xf32>
    %11 = vector.shape_cast %10 : vector<1x1x1x8xf32> to vector<1x8xf32>
    %12 = vector.extract_strided_slice %1 {offsets = [1, 0, 0], sizes = [1, 16, 8], strides = [1, 1, 1]} : vector<16x16x8xf32> to vector<1x16x8xf32>
    %13 = vector.shape_cast %12 : vector<1x16x8xf32> to vector<16x8xf32>
    %14 = vector.broadcast %11 : vector<1x8xf32> to vector<16x8xf32>
    %15 = arith.mulf %14, %13 : vector<16x8xf32>
    %16 = arith.addf %9, %15 : vector<16x8xf32>
    %c0_10 = arith.constant 0 : index
    %c0_11 = arith.constant 0 : index
    %c2 = arith.constant 2 : index
    %c0_12 = arith.constant 0 : index
    %17 = vector.load %arg3[%c0_10, %c0_11, %c2, %c0_12] : memref<1x4x16x8xf32, #tpu.memory_space<vmem>>, vector<1x1x1x8xf32>
    %18 = vector.shape_cast %17 : vector<1x1x1x8xf32> to vector<1x8xf32>
    %19 = vector.extract_strided_slice %1 {offsets = [2, 0, 0], sizes = [1, 16, 8], strides = [1, 1, 1]} : vector<16x16x8xf32> to vector<1x16x8xf32>
    %20 = vector.shape_cast %19 : vector<1x16x8xf32> to vector<16x8xf32>
    %21 = vector.broadcast %18 : vector<1x8xf32> to vector<16x8xf32>
    %22 = arith.mulf %21, %20 : vector<16x8xf32>
    %23 = arith.addf %16, %22 : vector<16x8xf32>
    %c0_13 = arith.constant 0 : index
    %c0_14 = arith.constant 0 : index
    %c3 = arith.constant 3 : index
    %c0_15 = arith.constant 0 : index
    %24 = vector.load %arg3[%c0_13, %c0_14, %c3, %c0_15] : memref<1x4x16x8xf32, #tpu.memory_space<vmem>>, vector<1x1x1x8xf32>
    %25 = vector.shape_cast %24 : vector<1x1x1x8xf32> to vector<1x8xf32>
    %26 = vector.extract_strided_slice %1 {offsets = [3, 0, 0], sizes = [1, 16, 8], strides = [1, 1, 1]} : vector<16x16x8xf32> to vector<1x16x8xf32>
    %27 = vector.shape_cast %26 : vector<1x16x8xf32> to vector<16x8xf32>
    %28 = vector.broadcast %25 : vector<1x8xf32> to vector<16x8xf32>
    %29 = arith.mulf %28, %27 : vector<16x8xf32>
    %30 = arith.addf %23, %29 : vector<16x8xf32>
    %c0_16 = arith.constant 0 : index
    %c0_17 = arith.constant 0 : index
    %c4 = arith.constant 4 : index
    %c0_18 = arith.constant 0 : index
    %31 = vector.load %arg3[%c0_16, %c0_17, %c4, %c0_18] : memref<1x4x16x8xf32, #tpu.memory_space<vmem>>, vector<1x1x1x8xf32>
    %32 = vector.shape_cast %31 : vector<1x1x1x8xf32> to vector<1x8xf32>
    %33 = vector.extract_strided_slice %1 {offsets = [4, 0, 0], sizes = [1, 16, 8], strides = [1, 1, 1]} : vector<16x16x8xf32> to vector<1x16x8xf32>
    %34 = vector.shape_cast %33 : vector<1x16x8xf32> to vector<16x8xf32>
    %35 = vector.broadcast %32 : vector<1x8xf32> to vector<16x8xf32>
    %36 = arith.mulf %35, %34 : vector<16x8xf32>
    %37 = arith.addf %30, %36 : vector<16x8xf32>
    %c0_19 = arith.constant 0 : index
    %c0_20 = arith.constant 0 : index
    %c5 = arith.constant 5 : index
    %c0_21 = arith.constant 0 : index
    %38 = vector.load %arg3[%c0_19, %c0_20, %c5, %c0_21] : memref<1x4x16x8xf32, #tpu.memory_space<vmem>>, vector<1x1x1x8xf32>
    %39 = vector.shape_cast %38 : vector<1x1x1x8xf32> to vector<1x8xf32>
    %40 = vector.extract_strided_slice %1 {offsets = [5, 0, 0], sizes = [1, 16, 8], strides = [1, 1, 1]} : vector<16x16x8xf32> to vector<1x16x8xf32>
    %41 = vector.shape_cast %40 : vector<1x16x8xf32> to vector<16x8xf32>
    %42 = vector.broadcast %39 : vector<1x8xf32> to vector<16x8xf32>
    %43 = arith.mulf %42, %41 : vector<16x8xf32>
    %44 = arith.addf %37, %43 : vector<16x8xf32>
    %c0_22 = arith.constant 0 : index
    %c0_23 = arith.constant 0 : index
    %c6 = arith.constant 6 : index
    %c0_24 = arith.constant 0 : index
    %45 = vector.load %arg3[%c0_22, %c0_23, %c6, %c0_24] : memref<1x4x16x8xf32, #tpu.memory_space<vmem>>, vector<1x1x1x8xf32>
    %46 = vector.shape_cast %45 : vector<1x1x1x8xf32> to vector<1x8xf32>
    %47 = vector.extract_strided_slice %1 {offsets = [6, 0, 0], sizes = [1, 16, 8], strides = [1, 1, 1]} : vector<16x16x8xf32> to vector<1x16x8xf32>
    %48 = vector.shape_cast %47 : vector<1x16x8xf32> to vector<16x8xf32>
    %49 = vector.broadcast %46 : vector<1x8xf32> to vector<16x8xf32>
    %50 = arith.mulf %49, %48 : vector<16x8xf32>
    %51 = arith.addf %44, %50 : vector<16x8xf32>
    %c0_25 = arith.constant 0 : index
    %c0_26 = arith.constant 0 : index
    %c7 = arith.constant 7 : index
    %c0_27 = arith.constant 0 : index
    %52 = vector.load %arg3[%c0_25, %c0_26, %c7, %c0_27] : memref<1x4x16x8xf32, #tpu.memory_space<vmem>>, vector<1x1x1x8xf32>
    %53 = vector.shape_cast %52 : vector<1x1x1x8xf32> to vector<1x8xf32>
    %54 = vector.extract_strided_slice %1 {offsets = [7, 0, 0], sizes = [1, 16, 8], strides = [1, 1, 1]} : vector<16x16x8xf32> to vector<1x16x8xf32>
    %55 = vector.shape_cast %54 : vector<1x16x8xf32> to vector<16x8xf32>
    %56 = vector.broadcast %53 : vector<1x8xf32> to vector<16x8xf32>
    %57 = arith.mulf %56, %55 : vector<16x8xf32>
    %58 = arith.addf %51, %57 : vector<16x8xf32>
    %c0_28 = arith.constant 0 : index
    %c0_29 = arith.constant 0 : index
    %c8 = arith.constant 8 : index
    %c0_30 = arith.constant 0 : index
    %59 = vector.load %arg3[%c0_28, %c0_29, %c8, %c0_30] : memref<1x4x16x8xf32, #tpu.memory_space<vmem>>, vector<1x1x1x8xf32>
    %60 = vector.shape_cast %59 : vector<1x1x1x8xf32> to vector<1x8xf32>
    %61 = vector.extract_strided_slice %1 {offsets = [8, 0, 0], sizes = [1, 16, 8], strides = [1, 1, 1]} : vector<16x16x8xf32> to vector<1x16x8xf32>
    %62 = vector.shape_cast %61 : vector<1x16x8xf32> to vector<16x8xf32>
    %63 = vector.broadcast %60 : vector<1x8xf32> to vector<16x8xf32>
    %64 = arith.mulf %63, %62 : vector<16x8xf32>
    %65 = arith.addf %58, %64 : vector<16x8xf32>
    %c0_31 = arith.constant 0 : index
    %c0_32 = arith.constant 0 : index
    %c9 = arith.constant 9 : index
    %c0_33 = arith.constant 0 : index
    %66 = vector.load %arg3[%c0_31, %c0_32, %c9, %c0_33] : memref<1x4x16x8xf32, #tpu.memory_space<vmem>>, vector<1x1x1x8xf32>
    %67 = vector.shape_cast %66 : vector<1x1x1x8xf32> to vector<1x8xf32>
    %68 = vector.extract_strided_slice %1 {offsets = [9, 0, 0], sizes = [1, 16, 8], strides = [1, 1, 1]} : vector<16x16x8xf32> to vector<1x16x8xf32>
    %69 = vector.shape_cast %68 : vector<1x16x8xf32> to vector<16x8xf32>
    %70 = vector.broadcast %67 : vector<1x8xf32> to vector<16x8xf32>
    %71 = arith.mulf %70, %69 : vector<16x8xf32>
    %72 = arith.addf %65, %71 : vector<16x8xf32>
    %c0_34 = arith.constant 0 : index
    %c0_35 = arith.constant 0 : index
    %c10 = arith.constant 10 : index
    %c0_36 = arith.constant 0 : index
    %73 = vector.load %arg3[%c0_34, %c0_35, %c10, %c0_36] : memref<1x4x16x8xf32, #tpu.memory_space<vmem>>, vector<1x1x1x8xf32>
    %74 = vector.shape_cast %73 : vector<1x1x1x8xf32> to vector<1x8xf32>
    %75 = vector.extract_strided_slice %1 {offsets = [10, 0, 0], sizes = [1, 16, 8], strides = [1, 1, 1]} : vector<16x16x8xf32> to vector<1x16x8xf32>
    %76 = vector.shape_cast %75 : vector<1x16x8xf32> to vector<16x8xf32>
    %77 = vector.broadcast %74 : vector<1x8xf32> to vector<16x8xf32>
    %78 = arith.mulf %77, %76 : vector<16x8xf32>
    %79 = arith.addf %72, %78 : vector<16x8xf32>
    %c0_37 = arith.constant 0 : index
    %c0_38 = arith.constant 0 : index
    %c11 = arith.constant 11 : index
    %c0_39 = arith.constant 0 : index
    %80 = vector.load %arg3[%c0_37, %c0_38, %c11, %c0_39] : memref<1x4x16x8xf32, #tpu.memory_space<vmem>>, vector<1x1x1x8xf32>
    %81 = vector.shape_cast %80 : vector<1x1x1x8xf32> to vector<1x8xf32>
    %82 = vector.extract_strided_slice %1 {offsets = [11, 0, 0], sizes = [1, 16, 8], strides = [1, 1, 1]} : vector<16x16x8xf32> to vector<1x16x8xf32>
    %83 = vector.shape_cast %82 : vector<1x16x8xf32> to vector<16x8xf32>
    %84 = vector.broadcast %81 : vector<1x8xf32> to vector<16x8xf32>
    %85 = arith.mulf %84, %83 : vector<16x8xf32>
    %86 = arith.addf %79, %85 : vector<16x8xf32>
    %c0_40 = arith.constant 0 : index
    %c0_41 = arith.constant 0 : index
    %c12 = arith.constant 12 : index
    %c0_42 = arith.constant 0 : index
    %87 = vector.load %arg3[%c0_40, %c0_41, %c12, %c0_42] : memref<1x4x16x8xf32, #tpu.memory_space<vmem>>, vector<1x1x1x8xf32>
    %88 = vector.shape_cast %87 : vector<1x1x1x8xf32> to vector<1x8xf32>
    %89 = vector.extract_strided_slice %1 {offsets = [12, 0, 0], sizes = [1, 16, 8], strides = [1, 1, 1]} : vector<16x16x8xf32> to vector<1x16x8xf32>
    %90 = vector.shape_cast %89 : vector<1x16x8xf32> to vector<16x8xf32>
    %91 = vector.broadcast %88 : vector<1x8xf32> to vector<16x8xf32>
    %92 = arith.mulf %91, %90 : vector<16x8xf32>
    %93 = arith.addf %86, %92 : vector<16x8xf32>
    %c0_43 = arith.constant 0 : index
    %c0_44 = arith.constant 0 : index
    %c13 = arith.constant 13 : index
    %c0_45 = arith.constant 0 : index
    %94 = vector.load %arg3[%c0_43, %c0_44, %c13, %c0_45] : memref<1x4x16x8xf32, #tpu.memory_space<vmem>>, vector<1x1x1x8xf32>
    %95 = vector.shape_cast %94 : vector<1x1x1x8xf32> to vector<1x8xf32>
    %96 = vector.extract_strided_slice %1 {offsets = [13, 0, 0], sizes = [1, 16, 8], strides = [1, 1, 1]} : vector<16x16x8xf32> to vector<1x16x8xf32>
    %97 = vector.shape_cast %96 : vector<1x16x8xf32> to vector<16x8xf32>
    %98 = vector.broadcast %95 : vector<1x8xf32> to vector<16x8xf32>
    %99 = arith.mulf %98, %97 : vector<16x8xf32>
    %100 = arith.addf %93, %99 : vector<16x8xf32>
    %c0_46 = arith.constant 0 : index
    %c0_47 = arith.constant 0 : index
    %c14 = arith.constant 14 : index
    %c0_48 = arith.constant 0 : index
    %101 = vector.load %arg3[%c0_46, %c0_47, %c14, %c0_48] : memref<1x4x16x8xf32, #tpu.memory_space<vmem>>, vector<1x1x1x8xf32>
    %102 = vector.shape_cast %101 : vector<1x1x1x8xf32> to vector<1x8xf32>
    %103 = vector.extract_strided_slice %1 {offsets = [14, 0, 0], sizes = [1, 16, 8], strides = [1, 1, 1]} : vector<16x16x8xf32> to vector<1x16x8xf32>
    %104 = vector.shape_cast %103 : vector<1x16x8xf32> to vector<16x8xf32>
    %105 = vector.broadcast %102 : vector<1x8xf32> to vector<16x8xf32>
    %106 = arith.mulf %105, %104 : vector<16x8xf32>
    %107 = arith.addf %100, %106 : vector<16x8xf32>
    %c0_49 = arith.constant 0 : index
    %c0_50 = arith.constant 0 : index
    %c15 = arith.constant 15 : index
    %c0_51 = arith.constant 0 : index
    %108 = vector.load %arg3[%c0_49, %c0_50, %c15, %c0_51] : memref<1x4x16x8xf32, #tpu.memory_space<vmem>>, vector<1x1x1x8xf32>
    %109 = vector.shape_cast %108 : vector<1x1x1x8xf32> to vector<1x8xf32>
    %110 = vector.extract_strided_slice %1 {offsets = [15, 0, 0], sizes = [1, 16, 8], strides = [1, 1, 1]} : vector<16x16x8xf32> to vector<1x16x8xf32>
    %111 = vector.shape_cast %110 : vector<1x16x8xf32> to vector<16x8xf32>
    %112 = vector.broadcast %109 : vector<1x8xf32> to vector<16x8xf32>
    %113 = arith.mulf %112, %111 : vector<16x8xf32>
    %114 = arith.addf %107, %113 : vector<16x8xf32>
    %c0_52 = arith.constant 0 : index
    %c0_53 = arith.constant 0 : index
    %c0_54 = arith.constant 0 : index
    %c0_55 = arith.constant 0 : index
    %115 = vector.load %arg5[%c0_52, %c0_53, %c0_54, %c0_55] : memref<1x4x16x8xf32, #tpu.memory_space<vmem>>, vector<1x1x16x8xf32>
    %116 = vector.shape_cast %115 : vector<1x1x16x8xf32> to vector<16x8xf32>
    %117 = vector.shape_cast %114 : vector<16x8xf32> to vector<1x1x16x8xf32>
    tpu.vector_store %arg5[%c0_52, %c0_53, %c0_54, %c0_55], %117 {strides = array<i32>} : memref<1x4x16x8xf32, #tpu.memory_space<vmem>>, vector<1x1x16x8xf32>,
    %cst_56 = arith.constant 0.000000e+00 : f32
    %118 = vector.broadcast %cst_56 : f32 to vector<16x8xf32>
    %c0_57 = arith.constant 0 : index
    %c1_58 = arith.constant 1 : index
    %c0_59 = arith.constant 0 : index
    %c0_60 = arith.constant 0 : index
    %119 = vector.load %arg3[%c0_57, %c1_58, %c0_59, %c0_60] : memref<1x4x16x8xf32, #tpu.memory_space<vmem>>, vector<1x1x1x8xf32>
    %120 = vector.shape_cast %119 : vector<1x1x1x8xf32> to vector<1x8xf32>
    %121 = vector.extract_strided_slice %1 {offsets = [0, 0, 0], sizes = [1, 16, 8], strides = [1, 1, 1]} : vector<16x16x8xf32> to vector<1x16x8xf32>
    %122 = vector.shape_cast %121 : vector<1x16x8xf32> to vector<16x8xf32>
    %123 = vector.broadcast %120 : vector<1x8xf32> to vector<16x8xf32>
    %124 = arith.mulf %123, %122 : vector<16x8xf32>
    %125 = arith.addf %118, %124 : vector<16x8xf32>
    %c0_61 = arith.constant 0 : index
    %c1_62 = arith.constant 1 : index
    %c1_63 = arith.constant 1 : index
    %c0_64 = arith.constant 0 : index
    %126 = vector.load %arg3[%c0_61, %c1_62, %c1_63, %c0_64] : memref<1x4x16x8xf32, #tpu.memory_space<vmem>>, vector<1x1x1x8xf32>
    %127 = vector.shape_cast %126 : vector<1x1x1x8xf32> to vector<1x8xf32>
    %128 = vector.extract_strided_slice %1 {offsets = [1, 0, 0], sizes = [1, 16, 8], strides = [1, 1, 1]} : vector<16x16x8xf32> to vector<1x16x8xf32>
    %129 = vector.shape_cast %128 : vector<1x16x8xf32> to vector<16x8xf32>
    %130 = vector.broadcast %127 : vector<1x8xf32> to vector<16x8xf32>
    %131 = arith.mulf %130, %129 : vector<16x8xf32>
    %132 = arith.addf %125, %131 : vector<16x8xf32>
    %c0_65 = arith.constant 0 : index
    %c1_66 = arith.constant 1 : index
    %c2_67 = arith.constant 2 : index
    %c0_68 = arith.constant 0 : index
    %133 = vector.load %arg3[%c0_65, %c1_66, %c2_67, %c0_68] : memref<1x4x16x8xf32, #tpu.memory_space<vmem>>, vector<1x1x1x8xf32>
    %134 = vector.shape_cast %133 : vector<1x1x1x8xf32> to vector<1x8xf32>
    %135 = vector.extract_strided_slice %1 {offsets = [2, 0, 0], sizes = [1, 16, 8], strides = [1, 1, 1]} : vector<16x16x8xf32> to vector<1x16x8xf32>
    %136 = vector.shape_cast %135 : vector<1x16x8xf32> to vector<16x8xf32>
    %137 = vector.broadcast %134 : vector<1x8xf32> to vector<16x8xf32>
    %138 = arith.mulf %137, %136 : vector<16x8xf32>
    %139 = arith.addf %132, %138 : vector<16x8xf32>
    %c0_69 = arith.constant 0 : index
    %c1_70 = arith.constant 1 : index
    %c3_71 = arith.constant 3 : index
    %c0_72 = arith.constant 0 : index
    %140 = vector.load %arg3[%c0_69, %c1_70, %c3_71, %c0_72] : memref<1x4x16x8xf32, #tpu.memory_space<vmem>>, vector<1x1x1x8xf32>
    %141 = vector.shape_cast %140 : vector<1x1x1x8xf32> to vector<1x8xf32>
    %142 = vector.extract_strided_slice %1 {offsets = [3, 0, 0], sizes = [1, 16, 8], strides = [1, 1, 1]} : vector<16x16x8xf32> to vector<1x16x8xf32>
    %143 = vector.shape_cast %142 : vector<1x16x8xf32> to vector<16x8xf32>
    %144 = vector.broadcast %141 : vector<1x8xf32> to vector<16x8xf32>
    %145 = arith.mulf %144, %143 : vector<16x8xf32>
    %146 = arith.addf %139, %145 : vector<16x8xf32>
    %c0_73 = arith.constant 0 : index
    %c1_74 = arith.constant 1 : index
    %c4_75 = arith.constant 4 : index
    %c0_76 = arith.constant 0 : index
    %147 = vector.load %arg3[%c0_73, %c1_74, %c4_75, %c0_76] : memref<1x4x16x8xf32, #tpu.memory_space<vmem>>, vector<1x1x1x8xf32>
    %148 = vector.shape_cast %147 : vector<1x1x1x8xf32> to vector<1x8xf32>
    %149 = vector.extract_strided_slice %1 {offsets = [4, 0, 0], sizes = [1, 16, 8], strides = [1, 1, 1]} : vector<16x16x8xf32> to vector<1x16x8xf32>
    %150 = vector.shape_cast %149 : vector<1x16x8xf32> to vector<16x8xf32>
    %151 = vector.broadcast %148 : vector<1x8xf32> to vector<16x8xf32>
    %152 = arith.mulf %151, %150 : vector<16x8xf32>
    %153 = arith.addf %146, %152 : vector<16x8xf32>
    %c0_77 = arith.constant 0 : index
    %c1_78 = arith.constant 1 : index
    %c5_79 = arith.constant 5 : index
    %c0_80 = arith.constant 0 : index
    %154 = vector.load %arg3[%c0_77, %c1_78, %c5_79, %c0_80] : memref<1x4x16x8xf32, #tpu.memory_space<vmem>>, vector<1x1x1x8xf32>
    %155 = vector.shape_cast %154 : vector<1x1x1x8xf32> to vector<1x8xf32>
    %156 = vector.extract_strided_slice %1 {offsets = [5, 0, 0], sizes = [1, 16, 8], strides = [1, 1, 1]} : vector<16x16x8xf32> to vector<1x16x8xf32>
    %157 = vector.shape_cast %156 : vector<1x16x8xf32> to vector<16x8xf32>
    %158 = vector.broadcast %155 : vector<1x8xf32> to vector<16x8xf32>
    %159 = arith.mulf %158, %157 : vector<16x8xf32>
    %160 = arith.addf %153, %159 : vector<16x8xf32>
    %c0_81 = arith.constant 0 : index
    %c1_82 = arith.constant 1 : index
    %c6_83 = arith.constant 6 : index
    %c0_84 = arith.constant 0 : index
    %161 = vector.load %arg3[%c0_81, %c1_82, %c6_83, %c0_84] : memref<1x4x16x8xf32, #tpu.memory_space<vmem>>, vector<1x1x1x8xf32>
    %162 = vector.shape_cast %161 : vector<1x1x1x8xf32> to vector<1x8xf32>
    %163 = vector.extract_strided_slice %1 {offsets = [6, 0, 0], sizes = [1, 16, 8], strides = [1, 1, 1]} : vector<16x16x8xf32> to vector<1x16x8xf32>
    %164 = vector.shape_cast %163 : vector<1x16x8xf32> to vector<16x8xf32>
    %165 = vector.broadcast %162 : vector<1x8xf32> to vector<16x8xf32>
    %166 = arith.mulf %165, %164 : vector<16x8xf32>
    %167 = arith.addf %160, %166 : vector<16x8xf32>
    %c0_85 = arith.constant 0 : index
    %c1_86 = arith.constant 1 : index
    %c7_87 = arith.constant 7 : index
    %c0_88 = arith.constant 0 : index
    %168 = vector.load %arg3[%c0_85, %c1_86, %c7_87, %c0_88] : memref<1x4x16x8xf32, #tpu.memory_space<vmem>>, vector<1x1x1x8xf32>
    %169 = vector.shape_cast %168 : vector<1x1x1x8xf32> to vector<1x8xf32>
    %170 = vector.extract_strided_slice %1 {offsets = [7, 0, 0], sizes = [1, 16, 8], strides = [1, 1, 1]} : vector<16x16x8xf32> to vector<1x16x8xf32>
    %171 = vector.shape_cast %170 : vector<1x16x8xf32> to vector<16x8xf32>
    %172 = vector.broadcast %169 : vector<1x8xf32> to vector<16x8xf32>
    %173 = arith.mulf %172, %171 : vector<16x8xf32>
    %174 = arith.addf %167, %173 : vector<16x8xf32>
    %c0_89 = arith.constant 0 : index
    %c1_90 = arith.constant 1 : index
    %c8_91 = arith.constant 8 : index
    %c0_92 = arith.constant 0 : index
    %175 = vector.load %arg3[%c0_89, %c1_90, %c8_91, %c0_92] : memref<1x4x16x8xf32, #tpu.memory_space<vmem>>, vector<1x1x1x8xf32>
    %176 = vector.shape_cast %175 : vector<1x1x1x8xf32> to vector<1x8xf32>
    %177 = vector.extract_strided_slice %1 {offsets = [8, 0, 0], sizes = [1, 16, 8], strides = [1, 1, 1]} : vector<16x16x8xf32> to vector<1x16x8xf32>
    %178 = vector.shape_cast %177 : vector<1x16x8xf32> to vector<16x8xf32>
    %179 = vector.broadcast %176 : vector<1x8xf32> to vector<16x8xf32>
    %180 = arith.mulf %179, %178 : vector<16x8xf32>
    %181 = arith.addf %174, %180 : vector<16x8xf32>
    %c0_93 = arith.constant 0 : index
    %c1_94 = arith.constant 1 : index
    %c9_95 = arith.constant 9 : index
    %c0_96 = arith.constant 0 : index
    %182 = vector.load %arg3[%c0_93, %c1_94, %c9_95, %c0_96] : memref<1x4x16x8xf32, #tpu.memory_space<vmem>>, vector<1x1x1x8xf32>
    %183 = vector.shape_cast %182 : vector<1x1x1x8xf32> to vector<1x8xf32>
    %184 = vector.extract_strided_slice %1 {offsets = [9, 0, 0], sizes = [1, 16, 8], strides = [1, 1, 1]} : vector<16x16x8xf32> to vector<1x16x8xf32>
    %185 = vector.shape_cast %184 : vector<1x16x8xf32> to vector<16x8xf32>
    %186 = vector.broadcast %183 : vector<1x8xf32> to vector<16x8xf32>
    %187 = arith.mulf %186, %185 : vector<16x8xf32>
    %188 = arith.addf %181, %187 : vector<16x8xf32>
    %c0_97 = arith.constant 0 : index
    %c1_98 = arith.constant 1 : index
    %c10_99 = arith.constant 10 : index
    %c0_100 = arith.constant 0 : index
    %189 = vector.load %arg3[%c0_97, %c1_98, %c10_99, %c0_100] : memref<1x4x16x8xf32, #tpu.memory_space<vmem>>, vector<1x1x1x8xf32>
    %190 = vector.shape_cast %189 : vector<1x1x1x8xf32> to vector<1x8xf32>
    %191 = vector.extract_strided_slice %1 {offsets = [10, 0, 0], sizes = [1, 16, 8], strides = [1, 1, 1]} : vector<16x16x8xf32> to vector<1x16x8xf32>
    %192 = vector.shape_cast %191 : vector<1x16x8xf32> to vector<16x8xf32>
    %193 = vector.broadcast %190 : vector<1x8xf32> to vector<16x8xf32>
    %194 = arith.mulf %193, %192 : vector<16x8xf32>
    %195 = arith.addf %188, %194 : vector<16x8xf32>
    %c0_101 = arith.constant 0 : index
    %c1_102 = arith.constant 1 : index
    %c11_103 = arith.constant 11 : index
    %c0_104 = arith.constant 0 : index
    %196 = vector.load %arg3[%c0_101, %c1_102, %c11_103, %c0_104] : memref<1x4x16x8xf32, #tpu.memory_space<vmem>>, vector<1x1x1x8xf32>
    %197 = vector.shape_cast %196 : vector<1x1x1x8xf32> to vector<1x8xf32>
    %198 = vector.extract_strided_slice %1 {offsets = [11, 0, 0], sizes = [1, 16, 8], strides = [1, 1, 1]} : vector<16x16x8xf32> to vector<1x16x8xf32>
    %199 = vector.shape_cast %198 : vector<1x16x8xf32> to vector<16x8xf32>
    %200 = vector.broadcast %197 : vector<1x8xf32> to vector<16x8xf32>
    %201 = arith.mulf %200, %199 : vector<16x8xf32>
    %202 = arith.addf %195, %201 : vector<16x8xf32>
    %c0_105 = arith.constant 0 : index
    %c1_106 = arith.constant 1 : index
    %c12_107 = arith.constant 12 : index
    %c0_108 = arith.constant 0 : index
    %203 = vector.load %arg3[%c0_105, %c1_106, %c12_107, %c0_108] : memref<1x4x16x8xf32, #tpu.memory_space<vmem>>, vector<1x1x1x8xf32>
    %204 = vector.shape_cast %203 : vector<1x1x1x8xf32> to vector<1x8xf32>
    %205 = vector.extract_strided_slice %1 {offsets = [12, 0, 0], sizes = [1, 16, 8], strides = [1, 1, 1]} : vector<16x16x8xf32> to vector<1x16x8xf32>
    %206 = vector.shape_cast %205 : vector<1x16x8xf32> to vector<16x8xf32>
    %207 = vector.broadcast %204 : vector<1x8xf32> to vector<16x8xf32>
    %208 = arith.mulf %207, %206 : vector<16x8xf32>
    %209 = arith.addf %202, %208 : vector<16x8xf32>
    %c0_109 = arith.constant 0 : index
    %c1_110 = arith.constant 1 : index
    %c13_111 = arith.constant 13 : index
    %c0_112 = arith.constant 0 : index
    %210 = vector.load %arg3[%c0_109, %c1_110, %c13_111, %c0_112] : memref<1x4x16x8xf32, #tpu.memory_space<vmem>>, vector<1x1x1x8xf32>
    %211 = vector.shape_cast %210 : vector<1x1x1x8xf32> to vector<1x8xf32>
    %212 = vector.extract_strided_slice %1 {offsets = [13, 0, 0], sizes = [1, 16, 8], strides = [1, 1, 1]} : vector<16x16x8xf32> to vector<1x16x8xf32>
    %213 = vector.shape_cast %212 : vector<1x16x8xf32> to vector<16x8xf32>
    %214 = vector.broadcast %211 : vector<1x8xf32> to vector<16x8xf32>
    %215 = arith.mulf %214, %213 : vector<16x8xf32>
    %216 = arith.addf %209, %215 : vector<16x8xf32>
    %c0_113 = arith.constant 0 : index
    %c1_114 = arith.constant 1 : index
    %c14_115 = arith.constant 14 : index
    %c0_116 = arith.constant 0 : index
    %217 = vector.load %arg3[%c0_113, %c1_114, %c14_115, %c0_116] : memref<1x4x16x8xf32, #tpu.memory_space<vmem>>, vector<1x1x1x8xf32>
    %218 = vector.shape_cast %217 : vector<1x1x1x8xf32> to vector<1x8xf32>
    %219 = vector.extract_strided_slice %1 {offsets = [14, 0, 0], sizes = [1, 16, 8], strides = [1, 1, 1]} : vector<16x16x8xf32> to vector<1x16x8xf32>
    %220 = vector.shape_cast %219 : vector<1x16x8xf32> to vector<16x8xf32>
    %221 = vector.broadcast %218 : vector<1x8xf32> to vector<16x8xf32>
    %222 = arith.mulf %221, %220 : vector<16x8xf32>
    %223 = arith.addf %216, %222 : vector<16x8xf32>
    %c0_117 = arith.constant 0 : index
    %c1_118 = arith.constant 1 : index
    %c15_119 = arith.constant 15 : index
    %c0_120 = arith.constant 0 : index
    %224 = vector.load %arg3[%c0_117, %c1_118, %c15_119, %c0_120] : memref<1x4x16x8xf32, #tpu.memory_space<vmem>>, vector<1x1x1x8xf32>
    %225 = vector.shape_cast %224 : vector<1x1x1x8xf32> to vector<1x8xf32>
    %226 = vector.extract_strided_slice %1 {offsets = [15, 0, 0], sizes = [1, 16, 8], strides = [1, 1, 1]} : vector<16x16x8xf32> to vector<1x16x8xf32>
    %227 = vector.shape_cast %226 : vector<1x16x8xf32> to vector<16x8xf32>
    %228 = vector.broadcast %225 : vector<1x8xf32> to vector<16x8xf32>
    %229 = arith.mulf %228, %227 : vector<16x8xf32>
    %230 = arith.addf %223, %229 : vector<16x8xf32>
    %c0_121 = arith.constant 0 : index
    %c1_122 = arith.constant 1 : index
    %c0_123 = arith.constant 0 : index
    %c0_124 = arith.constant 0 : index
    %231 = vector.load %arg5[%c0_121, %c1_122, %c0_123, %c0_124] : memref<1x4x16x8xf32, #tpu.memory_space<vmem>>, vector<1x1x16x8xf32>
    %232 = vector.shape_cast %231 : vector<1x1x16x8xf32> to vector<16x8xf32>
    %233 = vector.shape_cast %230 : vector<16x8xf32> to vector<1x1x16x8xf32>
    tpu.vector_store %arg5[%c0_121, %c1_122, %c0_123, %c0_124], %233 {strides = array<i32>} : memref<1x4x16x8xf32, #tpu.memory_space<vmem>>, vector<1x1x16x8xf32>,
    %cst_125 = arith.constant 0.000000e+00 : f32
    %234 = vector.broadcast %cst_125 : f32 to vector<16x8xf32>
    %c0_126 = arith.constant 0 : index
    %c2_127 = arith.constant 2 : index
    %c0_128 = arith.constant 0 : index
    %c0_129 = arith.constant 0 : index
    %235 = vector.load %arg3[%c0_126, %c2_127, %c0_128, %c0_129] : memref<1x4x16x8xf32, #tpu.memory_space<vmem>>, vector<1x1x1x8xf32>
    %236 = vector.shape_cast %235 : vector<1x1x1x8xf32> to vector<1x8xf32>
    %237 = vector.extract_strided_slice %1 {offsets = [0, 0, 0], sizes = [1, 16, 8], strides = [1, 1, 1]} : vector<16x16x8xf32> to vector<1x16x8xf32>
    %238 = vector.shape_cast %237 : vector<1x16x8xf32> to vector<16x8xf32>
    %239 = vector.broadcast %236 : vector<1x8xf32> to vector<16x8xf32>
    %240 = arith.mulf %239, %238 : vector<16x8xf32>
    %241 = arith.addf %234, %240 : vector<16x8xf32>
    %c0_130 = arith.constant 0 : index
    %c2_131 = arith.constant 2 : index
    %c1_132 = arith.constant 1 : index
    %c0_133 = arith.constant 0 : index
    %242 = vector.load %arg3[%c0_130, %c2_131, %c1_132, %c0_133] : memref<1x4x16x8xf32, #tpu.memory_space<vmem>>, vector<1x1x1x8xf32>
    %243 = vector.shape_cast %242 : vector<1x1x1x8xf32> to vector<1x8xf32>
    %244 = vector.extract_strided_slice %1 {offsets = [1, 0, 0], sizes = [1, 16, 8], strides = [1, 1, 1]} : vector<16x16x8xf32> to vector<1x16x8xf32>
    %245 = vector.shape_cast %244 : vector<1x16x8xf32> to vector<16x8xf32>
    %246 = vector.broadcast %243 : vector<1x8xf32> to vector<16x8xf32>
    %247 = arith.mulf %246, %245 : vector<16x8xf32>
    %248 = arith.addf %241, %247 : vector<16x8xf32>
    %c0_134 = arith.constant 0 : index
    %c2_135 = arith.constant 2 : index
    %c2_136 = arith.constant 2 : index
    %c0_137 = arith.constant 0 : index
    %249 = vector.load %arg3[%c0_134, %c2_135, %c2_136, %c0_137] : memref<1x4x16x8xf32, #tpu.memory_space<vmem>>, vector<1x1x1x8xf32>
    %250 = vector.shape_cast %249 : vector<1x1x1x8xf32> to vector<1x8xf32>
    %251 = vector.extract_strided_slice %1 {offsets = [2, 0, 0], sizes = [1, 16, 8], strides = [1, 1, 1]} : vector<16x16x8xf32> to vector<1x16x8xf32>
    %252 = vector.shape_cast %251 : vector<1x16x8xf32> to vector<16x8xf32>
    %253 = vector.broadcast %250 : vector<1x8xf32> to vector<16x8xf32>
    %254 = arith.mulf %253, %252 : vector<16x8xf32>
    %255 = arith.addf %248, %254 : vector<16x8xf32>
    %c0_138 = arith.constant 0 : index
    %c2_139 = arith.constant 2 : index
    %c3_140 = arith.constant 3 : index
    %c0_141 = arith.constant 0 : index
    %256 = vector.load %arg3[%c0_138, %c2_139, %c3_140, %c0_141] : memref<1x4x16x8xf32, #tpu.memory_space<vmem>>, vector<1x1x1x8xf32>
    %257 = vector.shape_cast %256 : vector<1x1x1x8xf32> to vector<1x8xf32>
    %258 = vector.extract_strided_slice %1 {offsets = [3, 0, 0], sizes = [1, 16, 8], strides = [1, 1, 1]} : vector<16x16x8xf32> to vector<1x16x8xf32>
    %259 = vector.shape_cast %258 : vector<1x16x8xf32> to vector<16x8xf32>
    %260 = vector.broadcast %257 : vector<1x8xf32> to vector<16x8xf32>
    %261 = arith.mulf %260, %259 : vector<16x8xf32>
    %262 = arith.addf %255, %261 : vector<16x8xf32>
    %c0_142 = arith.constant 0 : index
    %c2_143 = arith.constant 2 : index
    %c4_144 = arith.constant 4 : index
    %c0_145 = arith.constant 0 : index
    %263 = vector.load %arg3[%c0_142, %c2_143, %c4_144, %c0_145] : memref<1x4x16x8xf32, #tpu.memory_space<vmem>>, vector<1x1x1x8xf32>
    %264 = vector.shape_cast %263 : vector<1x1x1x8xf32> to vector<1x8xf32>
    %265 = vector.extract_strided_slice %1 {offsets = [4, 0, 0], sizes = [1, 16, 8], strides = [1, 1, 1]} : vector<16x16x8xf32> to vector<1x16x8xf32>
    %266 = vector.shape_cast %265 : vector<1x16x8xf32> to vector<16x8xf32>
    %267 = vector.broadcast %264 : vector<1x8xf32> to vector<16x8xf32>
    %268 = arith.mulf %267, %266 : vector<16x8xf32>
    %269 = arith.addf %262, %268 : vector<16x8xf32>
    %c0_146 = arith.constant 0 : index
    %c2_147 = arith.constant 2 : index
    %c5_148 = arith.constant 5 : index
    %c0_149 = arith.constant 0 : index
    %270 = vector.load %arg3[%c0_146, %c2_147, %c5_148, %c0_149] : memref<1x4x16x8xf32, #tpu.memory_space<vmem>>, vector<1x1x1x8xf32>
    %271 = vector.shape_cast %270 : vector<1x1x1x8xf32> to vector<1x8xf32>
    %272 = vector.extract_strided_slice %1 {offsets = [5, 0, 0], sizes = [1, 16, 8], strides = [1, 1, 1]} : vector<16x16x8xf32> to vector<1x16x8xf32>
    %273 = vector.shape_cast %272 : vector<1x16x8xf32> to vector<16x8xf32>
    %274 = vector.broadcast %271 : vector<1x8xf32> to vector<16x8xf32>
    %275 = arith.mulf %274, %273 : vector<16x8xf32>
    %276 = arith.addf %269, %275 : vector<16x8xf32>
    %c0_150 = arith.constant 0 : index
    %c2_151 = arith.constant 2 : index
    %c6_152 = arith.constant 6 : index
    %c0_153 = arith.constant 0 : index
    %277 = vector.load %arg3[%c0_150, %c2_151, %c6_152, %c0_153] : memref<1x4x16x8xf32, #tpu.memory_space<vmem>>, vector<1x1x1x8xf32>
    %278 = vector.shape_cast %277 : vector<1x1x1x8xf32> to vector<1x8xf32>
    %279 = vector.extract_strided_slice %1 {offsets = [6, 0, 0], sizes = [1, 16, 8], strides = [1, 1, 1]} : vector<16x16x8xf32> to vector<1x16x8xf32>
    %280 = vector.shape_cast %279 : vector<1x16x8xf32> to vector<16x8xf32>
    %281 = vector.broadcast %278 : vector<1x8xf32> to vector<16x8xf32>
    %282 = arith.mulf %281, %280 : vector<16x8xf32>
    %283 = arith.addf %276, %282 : vector<16x8xf32>
    %c0_154 = arith.constant 0 : index
    %c2_155 = arith.constant 2 : index
    %c7_156 = arith.constant 7 : index
    %c0_157 = arith.constant 0 : index
    %284 = vector.load %arg3[%c0_154, %c2_155, %c7_156, %c0_157] : memref<1x4x16x8xf32, #tpu.memory_space<vmem>>, vector<1x1x1x8xf32>
    %285 = vector.shape_cast %284 : vector<1x1x1x8xf32> to vector<1x8xf32>
    %286 = vector.extract_strided_slice %1 {offsets = [7, 0, 0], sizes = [1, 16, 8], strides = [1, 1, 1]} : vector<16x16x8xf32> to vector<1x16x8xf32>
    %287 = vector.shape_cast %286 : vector<1x16x8xf32> to vector<16x8xf32>
    %288 = vector.broadcast %285 : vector<1x8xf32> to vector<16x8xf32>
    %289 = arith.mulf %288, %287 : vector<16x8xf32>
    %290 = arith.addf %283, %289 : vector<16x8xf32>
    %c0_158 = arith.constant 0 : index
    %c2_159 = arith.constant 2 : index
    %c8_160 = arith.constant 8 : index
    %c0_161 = arith.constant 0 : index
    %291 = vector.load %arg3[%c0_158, %c2_159, %c8_160, %c0_161] : memref<1x4x16x8xf32, #tpu.memory_space<vmem>>, vector<1x1x1x8xf32>
    %292 = vector.shape_cast %291 : vector<1x1x1x8xf32> to vector<1x8xf32>
    %293 = vector.extract_strided_slice %1 {offsets = [8, 0, 0], sizes = [1, 16, 8], strides = [1, 1, 1]} : vector<16x16x8xf32> to vector<1x16x8xf32>
    %294 = vector.shape_cast %293 : vector<1x16x8xf32> to vector<16x8xf32>
    %295 = vector.broadcast %292 : vector<1x8xf32> to vector<16x8xf32>
    %296 = arith.mulf %295, %294 : vector<16x8xf32>
    %297 = arith.addf %290, %296 : vector<16x8xf32>
    %c0_162 = arith.constant 0 : index
    %c2_163 = arith.constant 2 : index
    %c9_164 = arith.constant 9 : index
    %c0_165 = arith.constant 0 : index
    %298 = vector.load %arg3[%c0_162, %c2_163, %c9_164, %c0_165] : memref<1x4x16x8xf32, #tpu.memory_space<vmem>>, vector<1x1x1x8xf32>
    %299 = vector.shape_cast %298 : vector<1x1x1x8xf32> to vector<1x8xf32>
    %300 = vector.extract_strided_slice %1 {offsets = [9, 0, 0], sizes = [1, 16, 8], strides = [1, 1, 1]} : vector<16x16x8xf32> to vector<1x16x8xf32>
    %301 = vector.shape_cast %300 : vector<1x16x8xf32> to vector<16x8xf32>
    %302 = vector.broadcast %299 : vector<1x8xf32> to vector<16x8xf32>
    %303 = arith.mulf %302, %301 : vector<16x8xf32>
    %304 = arith.addf %297, %303 : vector<16x8xf32>
    %c0_166 = arith.constant 0 : index
    %c2_167 = arith.constant 2 : index
    %c10_168 = arith.constant 10 : index
    %c0_169 = arith.constant 0 : index
    %305 = vector.load %arg3[%c0_166, %c2_167, %c10_168, %c0_169] : memref<1x4x16x8xf32, #tpu.memory_space<vmem>>, vector<1x1x1x8xf32>
    %306 = vector.shape_cast %305 : vector<1x1x1x8xf32> to vector<1x8xf32>
    %307 = vector.extract_strided_slice %1 {offsets = [10, 0, 0], sizes = [1, 16, 8], strides = [1, 1, 1]} : vector<16x16x8xf32> to vector<1x16x8xf32>
    %308 = vector.shape_cast %307 : vector<1x16x8xf32> to vector<16x8xf32>
    %309 = vector.broadcast %306 : vector<1x8xf32> to vector<16x8xf32>
    %310 = arith.mulf %309, %308 : vector<16x8xf32>
    %311 = arith.addf %304, %310 : vector<16x8xf32>
    %c0_170 = arith.constant 0 : index
    %c2_171 = arith.constant 2 : index
    %c11_172 = arith.constant 11 : index
    %c0_173 = arith.constant 0 : index
    %312 = vector.load %arg3[%c0_170, %c2_171, %c11_172, %c0_173] : memref<1x4x16x8xf32, #tpu.memory_space<vmem>>, vector<1x1x1x8xf32>
    %313 = vector.shape_cast %312 : vector<1x1x1x8xf32> to vector<1x8xf32>
    %314 = vector.extract_strided_slice %1 {offsets = [11, 0, 0], sizes = [1, 16, 8], strides = [1, 1, 1]} : vector<16x16x8xf32> to vector<1x16x8xf32>
    %315 = vector.shape_cast %314 : vector<1x16x8xf32> to vector<16x8xf32>
    %316 = vector.broadcast %313 : vector<1x8xf32> to vector<16x8xf32>
    %317 = arith.mulf %316, %315 : vector<16x8xf32>
    %318 = arith.addf %311, %317 : vector<16x8xf32>
    %c0_174 = arith.constant 0 : index
    %c2_175 = arith.constant 2 : index
    %c12_176 = arith.constant 12 : index
    %c0_177 = arith.constant 0 : index
    %319 = vector.load %arg3[%c0_174, %c2_175, %c12_176, %c0_177] : memref<1x4x16x8xf32, #tpu.memory_space<vmem>>, vector<1x1x1x8xf32>
    %320 = vector.shape_cast %319 : vector<1x1x1x8xf32> to vector<1x8xf32>
    %321 = vector.extract_strided_slice %1 {offsets = [12, 0, 0], sizes = [1, 16, 8], strides = [1, 1, 1]} : vector<16x16x8xf32> to vector<1x16x8xf32>
    %322 = vector.shape_cast %321 : vector<1x16x8xf32> to vector<16x8xf32>
    %323 = vector.broadcast %320 : vector<1x8xf32> to vector<16x8xf32>
    %324 = arith.mulf %323, %322 : vector<16x8xf32>
    %325 = arith.addf %318, %324 : vector<16x8xf32>
    %c0_178 = arith.constant 0 : index
    %c2_179 = arith.constant 2 : index
    %c13_180 = arith.constant 13 : index
    %c0_181 = arith.constant 0 : index
    %326 = vector.load %arg3[%c0_178, %c2_179, %c13_180, %c0_181] : memref<1x4x16x8xf32, #tpu.memory_space<vmem>>, vector<1x1x1x8xf32>
    %327 = vector.shape_cast %326 : vector<1x1x1x8xf32> to vector<1x8xf32>
    %328 = vector.extract_strided_slice %1 {offsets = [13, 0, 0], sizes = [1, 16, 8], strides = [1, 1, 1]} : vector<16x16x8xf32> to vector<1x16x8xf32>
    %329 = vector.shape_cast %328 : vector<1x16x8xf32> to vector<16x8xf32>
    %330 = vector.broadcast %327 : vector<1x8xf32> to vector<16x8xf32>
    %331 = arith.mulf %330, %329 : vector<16x8xf32>
    %332 = arith.addf %325, %331 : vector<16x8xf32>
    %c0_182 = arith.constant 0 : index
    %c2_183 = arith.constant 2 : index
    %c14_184 = arith.constant 14 : index
    %c0_185 = arith.constant 0 : index
    %333 = vector.load %arg3[%c0_182, %c2_183, %c14_184, %c0_185] : memref<1x4x16x8xf32, #tpu.memory_space<vmem>>, vector<1x1x1x8xf32>
    %334 = vector.shape_cast %333 : vector<1x1x1x8xf32> to vector<1x8xf32>
    %335 = vector.extract_strided_slice %1 {offsets = [14, 0, 0], sizes = [1, 16, 8], strides = [1, 1, 1]} : vector<16x16x8xf32> to vector<1x16x8xf32>
    %336 = vector.shape_cast %335 : vector<1x16x8xf32> to vector<16x8xf32>
    %337 = vector.broadcast %334 : vector<1x8xf32> to vector<16x8xf32>
    %338 = arith.mulf %337, %336 : vector<16x8xf32>
    %339 = arith.addf %332, %338 : vector<16x8xf32>
    %c0_186 = arith.constant 0 : index
    %c2_187 = arith.constant 2 : index
    %c15_188 = arith.constant 15 : index
    %c0_189 = arith.constant 0 : index
    %340 = vector.load %arg3[%c0_186, %c2_187, %c15_188, %c0_189] : memref<1x4x16x8xf32, #tpu.memory_space<vmem>>, vector<1x1x1x8xf32>
    %341 = vector.shape_cast %340 : vector<1x1x1x8xf32> to vector<1x8xf32>
    %342 = vector.extract_strided_slice %1 {offsets = [15, 0, 0], sizes = [1, 16, 8], strides = [1, 1, 1]} : vector<16x16x8xf32> to vector<1x16x8xf32>
    %343 = vector.shape_cast %342 : vector<1x16x8xf32> to vector<16x8xf32>
    %344 = vector.broadcast %341 : vector<1x8xf32> to vector<16x8xf32>
    %345 = arith.mulf %344, %343 : vector<16x8xf32>
    %346 = arith.addf %339, %345 : vector<16x8xf32>
    %c0_190 = arith.constant 0 : index
    %c2_191 = arith.constant 2 : index
    %c0_192 = arith.constant 0 : index
    %c0_193 = arith.constant 0 : index
    %347 = vector.load %arg5[%c0_190, %c2_191, %c0_192, %c0_193] : memref<1x4x16x8xf32, #tpu.memory_space<vmem>>, vector<1x1x16x8xf32>
    %348 = vector.shape_cast %347 : vector<1x1x16x8xf32> to vector<16x8xf32>
    %349 = vector.shape_cast %346 : vector<16x8xf32> to vector<1x1x16x8xf32>
    tpu.vector_store %arg5[%c0_190, %c2_191, %c0_192, %c0_193], %349 {strides = array<i32>} : memref<1x4x16x8xf32, #tpu.memory_space<vmem>>, vector<1x1x16x8xf32>,
    %cst_194 = arith.constant 0.000000e+00 : f32
    %350 = vector.broadcast %cst_194 : f32 to vector<16x8xf32>
    %c0_195 = arith.constant 0 : index
    %c3_196 = arith.constant 3 : index
    %c0_197 = arith.constant 0 : index
    %c0_198 = arith.constant 0 : index
    %351 = vector.load %arg3[%c0_195, %c3_196, %c0_197, %c0_198] : memref<1x4x16x8xf32, #tpu.memory_space<vmem>>, vector<1x1x1x8xf32>
    %352 = vector.shape_cast %351 : vector<1x1x1x8xf32> to vector<1x8xf32>
    %353 = vector.extract_strided_slice %1 {offsets = [0, 0, 0], sizes = [1, 16, 8], strides = [1, 1, 1]} : vector<16x16x8xf32> to vector<1x16x8xf32>
    %354 = vector.shape_cast %353 : vector<1x16x8xf32> to vector<16x8xf32>
    %355 = vector.broadcast %352 : vector<1x8xf32> to vector<16x8xf32>
    %356 = arith.mulf %355, %354 : vector<16x8xf32>
    %357 = arith.addf %350, %356 : vector<16x8xf32>
    %c0_199 = arith.constant 0 : index
    %c3_200 = arith.constant 3 : index
    %c1_201 = arith.constant 1 : index
    %c0_202 = arith.constant 0 : index
    %358 = vector.load %arg3[%c0_199, %c3_200, %c1_201, %c0_202] : memref<1x4x16x8xf32, #tpu.memory_space<vmem>>, vector<1x1x1x8xf32>
    %359 = vector.shape_cast %358 : vector<1x1x1x8xf32> to vector<1x8xf32>
    %360 = vector.extract_strided_slice %1 {offsets = [1, 0, 0], sizes = [1, 16, 8], strides = [1, 1, 1]} : vector<16x16x8xf32> to vector<1x16x8xf32>
    %361 = vector.shape_cast %360 : vector<1x16x8xf32> to vector<16x8xf32>
    %362 = vector.broadcast %359 : vector<1x8xf32> to vector<16x8xf32>
    %363 = arith.mulf %362, %361 : vector<16x8xf32>
    %364 = arith.addf %357, %363 : vector<16x8xf32>
    %c0_203 = arith.constant 0 : index
    %c3_204 = arith.constant 3 : index
    %c2_205 = arith.constant 2 : index
    %c0_206 = arith.constant 0 : index
    %365 = vector.load %arg3[%c0_203, %c3_204, %c2_205, %c0_206] : memref<1x4x16x8xf32, #tpu.memory_space<vmem>>, vector<1x1x1x8xf32>
    %366 = vector.shape_cast %365 : vector<1x1x1x8xf32> to vector<1x8xf32>
    %367 = vector.extract_strided_slice %1 {offsets = [2, 0, 0], sizes = [1, 16, 8], strides = [1, 1, 1]} : vector<16x16x8xf32> to vector<1x16x8xf32>
    %368 = vector.shape_cast %367 : vector<1x16x8xf32> to vector<16x8xf32>
    %369 = vector.broadcast %366 : vector<1x8xf32> to vector<16x8xf32>
    %370 = arith.mulf %369, %368 : vector<16x8xf32>
    %371 = arith.addf %364, %370 : vector<16x8xf32>
    %c0_207 = arith.constant 0 : index
    %c3_208 = arith.constant 3 : index
    %c3_209 = arith.constant 3 : index
    %c0_210 = arith.constant 0 : index
    %372 = vector.load %arg3[%c0_207, %c3_208, %c3_209, %c0_210] : memref<1x4x16x8xf32, #tpu.memory_space<vmem>>, vector<1x1x1x8xf32>
    %373 = vector.shape_cast %372 : vector<1x1x1x8xf32> to vector<1x8xf32>
    %374 = vector.extract_strided_slice %1 {offsets = [3, 0, 0], sizes = [1, 16, 8], strides = [1, 1, 1]} : vector<16x16x8xf32> to vector<1x16x8xf32>
    %375 = vector.shape_cast %374 : vector<1x16x8xf32> to vector<16x8xf32>
    %376 = vector.broadcast %373 : vector<1x8xf32> to vector<16x8xf32>
    %377 = arith.mulf %376, %375 : vector<16x8xf32>
    %378 = arith.addf %371, %377 : vector<16x8xf32>
    %c0_211 = arith.constant 0 : index
    %c3_212 = arith.constant 3 : index
    %c4_213 = arith.constant 4 : index
    %c0_214 = arith.constant 0 : index
    %379 = vector.load %arg3[%c0_211, %c3_212, %c4_213, %c0_214] : memref<1x4x16x8xf32, #tpu.memory_space<vmem>>, vector<1x1x1x8xf32>
    %380 = vector.shape_cast %379 : vector<1x1x1x8xf32> to vector<1x8xf32>
    %381 = vector.extract_strided_slice %1 {offsets = [4, 0, 0], sizes = [1, 16, 8], strides = [1, 1, 1]} : vector<16x16x8xf32> to vector<1x16x8xf32>
    %382 = vector.shape_cast %381 : vector<1x16x8xf32> to vector<16x8xf32>
    %383 = vector.broadcast %380 : vector<1x8xf32> to vector<16x8xf32>
    %384 = arith.mulf %383, %382 : vector<16x8xf32>
    %385 = arith.addf %378, %384 : vector<16x8xf32>
    %c0_215 = arith.constant 0 : index
    %c3_216 = arith.constant 3 : index
    %c5_217 = arith.constant 5 : index
    %c0_218 = arith.constant 0 : index
    %386 = vector.load %arg3[%c0_215, %c3_216, %c5_217, %c0_218] : memref<1x4x16x8xf32, #tpu.memory_space<vmem>>, vector<1x1x1x8xf32>
    %387 = vector.shape_cast %386 : vector<1x1x1x8xf32> to vector<1x8xf32>
    %388 = vector.extract_strided_slice %1 {offsets = [5, 0, 0], sizes = [1, 16, 8], strides = [1, 1, 1]} : vector<16x16x8xf32> to vector<1x16x8xf32>
    %389 = vector.shape_cast %388 : vector<1x16x8xf32> to vector<16x8xf32>
    %390 = vector.broadcast %387 : vector<1x8xf32> to vector<16x8xf32>
    %391 = arith.mulf %390, %389 : vector<16x8xf32>
    %392 = arith.addf %385, %391 : vector<16x8xf32>
    %c0_219 = arith.constant 0 : index
    %c3_220 = arith.constant 3 : index
    %c6_221 = arith.constant 6 : index
    %c0_222 = arith.constant 0 : index
    %393 = vector.load %arg3[%c0_219, %c3_220, %c6_221, %c0_222] : memref<1x4x16x8xf32, #tpu.memory_space<vmem>>, vector<1x1x1x8xf32>
    %394 = vector.shape_cast %393 : vector<1x1x1x8xf32> to vector<1x8xf32>
    %395 = vector.extract_strided_slice %1 {offsets = [6, 0, 0], sizes = [1, 16, 8], strides = [1, 1, 1]} : vector<16x16x8xf32> to vector<1x16x8xf32>
    %396 = vector.shape_cast %395 : vector<1x16x8xf32> to vector<16x8xf32>
    %397 = vector.broadcast %394 : vector<1x8xf32> to vector<16x8xf32>
    %398 = arith.mulf %397, %396 : vector<16x8xf32>
    %399 = arith.addf %392, %398 : vector<16x8xf32>
    %c0_223 = arith.constant 0 : index
    %c3_224 = arith.constant 3 : index
    %c7_225 = arith.constant 7 : index
    %c0_226 = arith.constant 0 : index
    %400 = vector.load %arg3[%c0_223, %c3_224, %c7_225, %c0_226] : memref<1x4x16x8xf32, #tpu.memory_space<vmem>>, vector<1x1x1x8xf32>
    %401 = vector.shape_cast %400 : vector<1x1x1x8xf32> to vector<1x8xf32>
    %402 = vector.extract_strided_slice %1 {offsets = [7, 0, 0], sizes = [1, 16, 8], strides = [1, 1, 1]} : vector<16x16x8xf32> to vector<1x16x8xf32>
    %403 = vector.shape_cast %402 : vector<1x16x8xf32> to vector<16x8xf32>
    %404 = vector.broadcast %401 : vector<1x8xf32> to vector<16x8xf32>
    %405 = arith.mulf %404, %403 : vector<16x8xf32>
    %406 = arith.addf %399, %405 : vector<16x8xf32>
    %c0_227 = arith.constant 0 : index
    %c3_228 = arith.constant 3 : index
    %c8_229 = arith.constant 8 : index
    %c0_230 = arith.constant 0 : index
    %407 = vector.load %arg3[%c0_227, %c3_228, %c8_229, %c0_230] : memref<1x4x16x8xf32, #tpu.memory_space<vmem>>, vector<1x1x1x8xf32>
    %408 = vector.shape_cast %407 : vector<1x1x1x8xf32> to vector<1x8xf32>
    %409 = vector.extract_strided_slice %1 {offsets = [8, 0, 0], sizes = [1, 16, 8], strides = [1, 1, 1]} : vector<16x16x8xf32> to vector<1x16x8xf32>
    %410 = vector.shape_cast %409 : vector<1x16x8xf32> to vector<16x8xf32>
    %411 = vector.broadcast %408 : vector<1x8xf32> to vector<16x8xf32>
    %412 = arith.mulf %411, %410 : vector<16x8xf32>
    %413 = arith.addf %406, %412 : vector<16x8xf32>
    %c0_231 = arith.constant 0 : index
    %c3_232 = arith.constant 3 : index
    %c9_233 = arith.constant 9 : index
    %c0_234 = arith.constant 0 : index
    %414 = vector.load %arg3[%c0_231, %c3_232, %c9_233, %c0_234] : memref<1x4x16x8xf32, #tpu.memory_space<vmem>>, vector<1x1x1x8xf32>
    %415 = vector.shape_cast %414 : vector<1x1x1x8xf32> to vector<1x8xf32>
    %416 = vector.extract_strided_slice %1 {offsets = [9, 0, 0], sizes = [1, 16, 8], strides = [1, 1, 1]} : vector<16x16x8xf32> to vector<1x16x8xf32>
    %417 = vector.shape_cast %416 : vector<1x16x8xf32> to vector<16x8xf32>
    %418 = vector.broadcast %415 : vector<1x8xf32> to vector<16x8xf32>
    %419 = arith.mulf %418, %417 : vector<16x8xf32>
    %420 = arith.addf %413, %419 : vector<16x8xf32>
    %c0_235 = arith.constant 0 : index
    %c3_236 = arith.constant 3 : index
    %c10_237 = arith.constant 10 : index
    %c0_238 = arith.constant 0 : index
    %421 = vector.load %arg3[%c0_235, %c3_236, %c10_237, %c0_238] : memref<1x4x16x8xf32, #tpu.memory_space<vmem>>, vector<1x1x1x8xf32>
    %422 = vector.shape_cast %421 : vector<1x1x1x8xf32> to vector<1x8xf32>
    %423 = vector.extract_strided_slice %1 {offsets = [10, 0, 0], sizes = [1, 16, 8], strides = [1, 1, 1]} : vector<16x16x8xf32> to vector<1x16x8xf32>
    %424 = vector.shape_cast %423 : vector<1x16x8xf32> to vector<16x8xf32>
    %425 = vector.broadcast %422 : vector<1x8xf32> to vector<16x8xf32>
    %426 = arith.mulf %425, %424 : vector<16x8xf32>
    %427 = arith.addf %420, %426 : vector<16x8xf32>
    %c0_239 = arith.constant 0 : index
    %c3_240 = arith.constant 3 : index
    %c11_241 = arith.constant 11 : index
    %c0_242 = arith.constant 0 : index
    %428 = vector.load %arg3[%c0_239, %c3_240, %c11_241, %c0_242] : memref<1x4x16x8xf32, #tpu.memory_space<vmem>>, vector<1x1x1x8xf32>
    %429 = vector.shape_cast %428 : vector<1x1x1x8xf32> to vector<1x8xf32>
    %430 = vector.extract_strided_slice %1 {offsets = [11, 0, 0], sizes = [1, 16, 8], strides = [1, 1, 1]} : vector<16x16x8xf32> to vector<1x16x8xf32>
    %431 = vector.shape_cast %430 : vector<1x16x8xf32> to vector<16x8xf32>
    %432 = vector.broadcast %429 : vector<1x8xf32> to vector<16x8xf32>
    %433 = arith.mulf %432, %431 : vector<16x8xf32>
    %434 = arith.addf %427, %433 : vector<16x8xf32>
    %c0_243 = arith.constant 0 : index
    %c3_244 = arith.constant 3 : index
    %c12_245 = arith.constant 12 : index
    %c0_246 = arith.constant 0 : index
    %435 = vector.load %arg3[%c0_243, %c3_244, %c12_245, %c0_246] : memref<1x4x16x8xf32, #tpu.memory_space<vmem>>, vector<1x1x1x8xf32>
    %436 = vector.shape_cast %435 : vector<1x1x1x8xf32> to vector<1x8xf32>
    %437 = vector.extract_strided_slice %1 {offsets = [12, 0, 0], sizes = [1, 16, 8], strides = [1, 1, 1]} : vector<16x16x8xf32> to vector<1x16x8xf32>
    %438 = vector.shape_cast %437 : vector<1x16x8xf32> to vector<16x8xf32>
    %439 = vector.broadcast %436 : vector<1x8xf32> to vector<16x8xf32>
    %440 = arith.mulf %439, %438 : vector<16x8xf32>
    %441 = arith.addf %434, %440 : vector<16x8xf32>
    %c0_247 = arith.constant 0 : index
    %c3_248 = arith.constant 3 : index
    %c13_249 = arith.constant 13 : index
    %c0_250 = arith.constant 0 : index
    %442 = vector.load %arg3[%c0_247, %c3_248, %c13_249, %c0_250] : memref<1x4x16x8xf32, #tpu.memory_space<vmem>>, vector<1x1x1x8xf32>
    %443 = vector.shape_cast %442 : vector<1x1x1x8xf32> to vector<1x8xf32>
    %444 = vector.extract_strided_slice %1 {offsets = [13, 0, 0], sizes = [1, 16, 8], strides = [1, 1, 1]} : vector<16x16x8xf32> to vector<1x16x8xf32>
    %445 = vector.shape_cast %444 : vector<1x16x8xf32> to vector<16x8xf32>
    %446 = vector.broadcast %443 : vector<1x8xf32> to vector<16x8xf32>
    %447 = arith.mulf %446, %445 : vector<16x8xf32>
    %448 = arith.addf %441, %447 : vector<16x8xf32>
    %c0_251 = arith.constant 0 : index
    %c3_252 = arith.constant 3 : index
    %c14_253 = arith.constant 14 : index
    %c0_254 = arith.constant 0 : index
    %449 = vector.load %arg3[%c0_251, %c3_252, %c14_253, %c0_254] : memref<1x4x16x8xf32, #tpu.memory_space<vmem>>, vector<1x1x1x8xf32>
    %450 = vector.shape_cast %449 : vector<1x1x1x8xf32> to vector<1x8xf32>
    %451 = vector.extract_strided_slice %1 {offsets = [14, 0, 0], sizes = [1, 16, 8], strides = [1, 1, 1]} : vector<16x16x8xf32> to vector<1x16x8xf32>
    %452 = vector.shape_cast %451 : vector<1x16x8xf32> to vector<16x8xf32>
    %453 = vector.broadcast %450 : vector<1x8xf32> to vector<16x8xf32>
    %454 = arith.mulf %453, %452 : vector<16x8xf32>
    %455 = arith.addf %448, %454 : vector<16x8xf32>
    %c0_255 = arith.constant 0 : index
    %c3_256 = arith.constant 3 : index
    %c15_257 = arith.constant 15 : index
    %c0_258 = arith.constant 0 : index
    %456 = vector.load %arg3[%c0_255, %c3_256, %c15_257, %c0_258] : memref<1x4x16x8xf32, #tpu.memory_space<vmem>>, vector<1x1x1x8xf32>
    %457 = vector.shape_cast %456 : vector<1x1x1x8xf32> to vector<1x8xf32>
    %458 = vector.extract_strided_slice %1 {offsets = [15, 0, 0], sizes = [1, 16, 8], strides = [1, 1, 1]} : vector<16x16x8xf32> to vector<1x16x8xf32>
    %459 = vector.shape_cast %458 : vector<1x16x8xf32> to vector<16x8xf32>
    %460 = vector.broadcast %457 : vector<1x8xf32> to vector<16x8xf32>
    %461 = arith.mulf %460, %459 : vector<16x8xf32>
    %462 = arith.addf %455, %461 : vector<16x8xf32>
    %c0_259 = arith.constant 0 : index
    %c3_260 = arith.constant 3 : index
    %c0_261 = arith.constant 0 : index
    %c0_262 = arith.constant 0 : index
    %463 = vector.load %arg5[%c0_259, %c3_260, %c0_261, %c0_262] : memref<1x4x16x8xf32, #tpu.memory_space<vmem>>, vector<1x1x16x8xf32>
    %464 = vector.shape_cast %463 : vector<1x1x16x8xf32> to vector<16x8xf32>
    %465 = vector.shape_cast %462 : vector<16x8xf32> to vector<1x1x16x8xf32>
    tpu.vector_store %arg5[%c0_259, %c3_260, %c0_261, %c0_262], %465 {strides = array<i32>} : memref<1x4x16x8xf32, #tpu.memory_space<vmem>>, vector<1x1x16x8xf32>,
    return
  }
  func.func @transform_0(%arg0: i32, %arg1: i32, %arg2: i32) -> (i32, i32, i32, i32) {
    %c0_i32 = arith.constant 0 : i32
    %c0_i32_0 = arith.constant 0 : i32
    return %arg0, %arg1, %c0_i32, %arg2 : i32, i32, i32, i32
  }
  func.func @transform_1(%arg0: i32, %arg1: i32, %arg2: i32) -> (i32, i32, i32, i32) {
    %c0_i32 = arith.constant 0 : i32
    %c0_i32_0 = arith.constant 0 : i32
    %c0_i32_1 = arith.constant 0 : i32
    return %arg0, %c0_i32, %c0_i32_0, %arg2 : i32, i32, i32, i32
  }
  func.func @transform_2(%arg0: i32, %arg1: i32, %arg2: i32) -> (i32, i32, i32, i32) {
    %c0_i32 = arith.constant 0 : i32
    %c0_i32_0 = arith.constant 0 : i32
    return %arg0, %arg1, %c0_i32, %arg2 : i32, i32, i32, i32
  }
}

</mosaic_0001>

<llo_original>
// kernel: tpu_custom_call.1
$region0: #{tpu_custom_call.1}
  #allocation0 [shape = 'u32[]', space=smem, size = 0x4, offset = 0x4, fixed_abs, tag = 'smem constant byte address 0x4 - core index']
  #allocation1 [shape = 'u32[144,128]{1,0:T(1,128)}', space=vmem, size = 0x12000, scoped, tag = 'internal scratch']
  %s0 = inlined_call_operand.vmem [shape: f32[2,4,16,8], index: 0, kind: input, shape index: {}]
  %s1 = inlined_call_operand.vmem [shape: f32[2,16,16,8], index: 1, kind: input, shape index: {}]
  %s2 = inlined_call_operand.vmem [shape: f32[2,4,16,8], index: 2, kind: output, shape index: {}]
  %s3 = sld [smem:[#allocation0]]
  $region41: #{tpu_custom_call.1} parent=0
    _
  %s5 = ssub.s32 1, %s3
  %s6 = scalar_select 0, %s5, %s3
  loop: start=0, step=1, limit=4
  $region2: #{tpu_custom_call.1} parent=0 // loop_pre_header
    _
  $region3: #{tpu_custom_call.1} parent=0 // loop_header
    %s8 = sphi 0, %s12
    %p9 = scmp.ge.s32.totalorder %s8, 4
    %s15 = sphi 0, %s34
    %s16 = sphi 0, %s30
    %s17 = sphi 0, %s26
    %s18 = sphi 0, %s15
    %s19 = sphi 0, %s16
    %s20 = sphi 0, %s17
    %s21 = sphi 0, %s18
    %s22 = sphi 0, %s19
    %s23 = sphi 0, %s20
    %s41 = sphi 0, %s43
    %s44 = sphi 0, %s41
    %s45 = sphi 0, %s44
    %s61 = sphi 0, %s45
    %s69 = sphi 0, %s71
    %s72 = sphi 0, %s69
    %s73 = sphi 0, %s72
    %s89 = sphi 0, %s73
    %s99 = sphi 0, %s101
    %s102 = sphi 0, %s99
    %s103 = sphi 0, %s102
    %s119 = sphi 0, %s103
  $region4: #{tpu_custom_call.1} parent=0 // loop_header_branch
    %11 = sbr.rel (%p9) target = $region8
  $region5: #{tpu_custom_call.1} parent=0 // loop_body
    %s13 = ssub.s32 %s8, 1
    %s14 = ssub.s32 %s8, 2
    %s24 = sadd.s32 1, %s17
    %p25 = scmp.ge.s32.totalorder %s24, 1
    %s26 = scalar_select %p25, 0, %s24
    %s27 = sadd.s32 1, %s16
    %s28 = scalar_select %p25, %s27, %s16
    %p29 = scmp.ge.s32.totalorder %s28, 1
    %s30 = scalar_select %p29, 0, %s28
    %s31 = sadd.s32 1, %s15
    %s32 = scalar_select %p29, %s31, %s15
    %p33 = scmp.ge.s32.totalorder %s32, 2
    %s34 = scalar_select %p33, 0, %s32
    %s35 = ssub.s32 %s15, %s34
    %s36 = ssub.s32 %s16, %s30
    %s37 = sor.u32 %s35, %s36
    %s38 = ssub.s32 %s17, %s26
    %s39 = sor.u32 %s37, %s38
    %p40 = scmp.eq.s32.totalorder %s39, 0
    %s42 = sadd.s32 %s41, 1
    %s43 = scalar_select %p40, %s41, %s42
    %p46 = pneg %p40
    %p47 = scmp.eq.s32.totalorder %s8, 1
    %p48 = por %p46, %p47
    %p49 = scmp.ne.s32.totalorder %s41, %s44
    %p50 = scmp.eq.s32.totalorder %s8, 0
    %p51 = por %p49, %p50
    %p52 = scmp.ne.s32.totalorder %s41, %s44
    %p53 = scmp.eq.s32.totalorder %s13, 1
    %p54 = por %p52, %p53
    %p55 = scmp.ne.s32.totalorder %s44, %s45
    %p56 = scmp.eq.s32.totalorder %s13, 0
    %p57 = por %p55, %p56
    %p58 = scmp.ne.s32.totalorder %s44, %s45
    %p59 = scmp.eq.s32.totalorder %s14, 1
    %p60 = por %p58, %p59
    %p62 = scmp.ne.s32.totalorder %s45, %s61
    %p63 = scmp.eq.s32.totalorder %s14, 0
    %p64 = por %p62, %p63
    %s65 = ssub.s32 %s15, %s34
    %s66 = ssub.s32 %s17, %s26
    %s67 = sor.u32 %s65, %s66
    %p68 = scmp.eq.s32.totalorder %s67, 0
    %s70 = sadd.s32 %s69, 1
    %s71 = scalar_select %p68, %s69, %s70
    %p74 = pneg %p68
    %p75 = scmp.eq.s32.totalorder %s8, 1
    %p76 = por %p74, %p75
    %p77 = scmp.ne.s32.totalorder %s69, %s72
    %p78 = scmp.eq.s32.totalorder %s8, 0
    %p79 = por %p77, %p78
    %p80 = scmp.ne.s32.totalorder %s69, %s72
    %p81 = scmp.eq.s32.totalorder %s13, 1
    %p82 = por %p80, %p81
    %p83 = scmp.ne.s32.totalorder %s72, %s73
    %p84 = scmp.eq.s32.totalorder %s13, 0
    %p85 = por %p83, %p84
    %p86 = scmp.ne.s32.totalorder %s72, %s73
    %p87 = scmp.eq.s32.totalorder %s14, 1
    %p88 = por %p86, %p87
    %p90 = scmp.ne.s32.totalorder %s73, %s89
    %p91 = scmp.eq.s32.totalorder %s14, 0
    %p92 = por %p90, %p91
    %s93 = ssub.s32 %s15, %s34
    %s94 = ssub.s32 %s16, %s30
    %s95 = sor.u32 %s93, %s94
    %s96 = ssub.s32 %s17, %s26
    %s97 = sor.u32 %s95, %s96
    %p98 = scmp.eq.s32.totalorder %s97, 0
    %s100 = sadd.s32 %s99, 1
    %s101 = scalar_select %p98, %s99, %s100
    %p104 = pneg %p98
    %p105 = scmp.eq.s32.totalorder %s8, 1
    %p106 = por %p104, %p105
    %p107 = scmp.ne.s32.totalorder %s99, %s102
    %p108 = scmp.eq.s32.totalorder %s8, 0
    %p109 = por %p107, %p108
    %p110 = scmp.ne.s32.totalorder %s99, %s102
    %p111 = scmp.eq.s32.totalorder %s13, 1
    %p112 = por %p110, %p111
    %p113 = scmp.ne.s32.totalorder %s102, %s103
    %p114 = scmp.eq.s32.totalorder %s13, 0
    %p115 = por %p113, %p114
    %p116 = scmp.ne.s32.totalorder %s102, %s103
    %p117 = scmp.eq.s32.totalorder %s14, 1
    %p118 = por %p116, %p117
    %p120 = scmp.ne.s32.totalorder %s103, %s119
    %p121 = scmp.eq.s32.totalorder %s14, 0
    %p122 = por %p120, %p121
    %p123 = scmp.le.s32.totalorder 1, %s8
    %p124 = scmp.lt.s32.totalorder %s8, 3
    %p125 = pnand %p123, %p124
    %p126 = pneg %p125
    // Predicated region
    $region9: #{tpu_custom_call.1} parent=5 // pred_check
      _
    $region10: #{tpu_custom_call.1} parent=5 // pred_check_branch
      %128 = sbr.rel (%p125) target = $region12
    $region11: #{tpu_custom_call.1} parent=5 // pred_region
      %s129 = ssub.s32 %s8, 1
    $region12: #{tpu_custom_call.1} parent=5 // pred_fallthru
      _
    %p130 = scmp.lt.s32.totalorder %s8, 2
    // Predicated region
    $region13: #{tpu_custom_call.1} parent=5 // pred_check
      %p131 = pneg %p130
    $region14: #{tpu_custom_call.1} parent=5 // pred_check_branch
      %133 = sbr.rel (%p131) target = $region16
    $region15: #{tpu_custom_call.1} parent=5 // pred_region
      // Predicated region
      $region17: #{tpu_custom_call.1} parent=15 // pred_check
        %p134 = pneg %p51
      $region18: #{tpu_custom_call.1} parent=15 // pred_check_branch
        %136 = sbr.rel (%p134) target = $region20
      $region19: #{tpu_custom_call.1} parent=15 // pred_region
        %s137 = smul.u32 4, %s16
        %p138 = scmp.lt.s32.totalorder %s15, 1
        %s139 = scalar_select %p138, %s15, 1
        %p140 = scmp.lt.s32.totalorder %s137, 3
        %s141 = scalar_select %p140, %s137, 3
        %p142 = scmp.lt.s32.totalorder %s17, 0
        %s143 = scalar_select %p142, %s17, 0
        %s144 = smul.addr %s141, 2
        %s145 = sadd.s32 %s143, %s144
        %s146 = smul.addr %s139, 8
        %s147 = sadd.s32 %s145, %s146
        %s148 = smul.addr %s147, 8
        %s149 = scalar_lea.vmem %s0, %s148
        %s150 = smul.u32 4, %s16
      $region20: #{tpu_custom_call.1} parent=15 // pred_fallthru
        _
      // Predicated region
      $region21: #{tpu_custom_call.1} parent=15 // pred_check
        %p151 = pneg %p79
      $region22: #{tpu_custom_call.1} parent=15 // pred_check_branch
        %153 = sbr.rel (%p151) target = $region24
      $region23: #{tpu_custom_call.1} parent=15 // pred_region
        %p154 = scmp.lt.s32.totalorder %s15, 1
        %s155 = scalar_select %p154, %s15, 1
        %p156 = scmp.lt.s32.totalorder %s17, 0
        %s157 = scalar_select %p156, %s17, 0
        %s158 = smul.addr %s155, 32
        %s159 = sadd.s32 %s157, %s158
        %s160 = smul.addr %s159, 8
        %s161 = scalar_lea.vmem %s1, %s160
      $region24: #{tpu_custom_call.1} parent=15 // pred_fallthru
        _
    $region16: #{tpu_custom_call.1} parent=5 // pred_fallthru
      _
    %p162 = scmp.le.s32.totalorder 1, %s8
    %p163 = scmp.lt.s32.totalorder %s8, 3
    %p164 = pnand %p162, %p163
    %p165 = pneg %p164
    // Predicated region
    $region25: #{tpu_custom_call.1} parent=5 // pred_check
      _
    $region26: #{tpu_custom_call.1} parent=5 // pred_check_branch
      %167 = sbr.rel (%p164) target = $region28
    $region27: #{tpu_custom_call.1} parent=5 // pred_region
      %s168 = ssub.s32 %s8, 1
      %s169 = smul.u32 4, %s19
      %p170 = scmp.lt.s32.totalorder %s18, 1
      %s171 = scalar_select %p170, %s18, 1
      %p172 = scmp.lt.s32.totalorder %s169, 3
      %s173 = scalar_select %p172, %s169, 3
      %p174 = scmp.lt.s32.totalorder %s20, 0
      %s175 = scalar_select %p174, %s20, 0
      %s176 = smul.addr %s173, 2
      %s177 = sadd.s32 %s175, %s176
      %s178 = smul.addr %s171, 8
      %s179 = sadd.s32 %s177, %s178
      %s180 = smul.addr %s179, 8
      %s181 = scalar_lea.vmem %s0, %s180
      %p182 = pneg %p57
      %p183 = pneg %p54
      %p184 = scmp.lt.s32.totalorder %s18, 1
      %s185 = scalar_select %p184, %s18, 1
      %p186 = scmp.lt.s32.totalorder %s20, 0
      %s187 = scalar_select %p186, %s20, 0
      %s188 = smul.addr %s185, 32
      %s189 = sadd.s32 %s187, %s188
      %s190 = smul.addr %s189, 8
      %s191 = scalar_lea.vmem %s1, %s190
      %p192 = pneg %p85
      %p193 = pneg %p82
      %p194 = pneg %p115
      %p195 = pneg %p112
      %s196 = smul.u32 4, %s19
      %p197 = scmp.lt.s32.totalorder %s18, 1
      %s198 = scalar_select %p197, %s18, 1
      %p199 = scmp.lt.s32.totalorder %s196, 3
      %s200 = scalar_select %p199, %s196, 3
      %p201 = scmp.lt.s32.totalorder %s20, 0
      %s202 = scalar_select %p201, %s20, 0
      %s203 = smul.addr %s200, 2
      %s204 = sadd.s32 %s202, %s203
      %s205 = smul.addr %s198, 8
      %s206 = sadd.s32 %s204, %s205
      %s207 = smul.addr %s206, 8
      %s208 = scalar_lea.vmem %s2, %s207
      %s209 = smul.u32 4, %s19
      %p210 = scmp.lt.s32.totalorder %s18, 1
      %s211 = scalar_select %p210, %s18, 1
      %p212 = scmp.lt.s32.totalorder %s209, 3
      %s213 = scalar_select %p212, %s209, 3
      %p214 = scmp.lt.s32.totalorder %s20, 0
      %s215 = scalar_select %p214, %s20, 0
      %s216 = smul.addr %s213, 2
      %s217 = sadd.s32 %s215, %s216
      %s218 = smul.addr %s211, 8
      %s219 = sadd.s32 %s217, %s218
      %s220 = smul.addr %s219, 8
      %s221 = scalar_lea.vmem %s0, %s220
      %s222 = smul.u32 4, %s19
      %p223 = scmp.lt.s32.totalorder %s18, 1
      %s224 = scalar_select %p223, %s18, 1
      %p225 = scmp.lt.s32.totalorder %s20, 0
      %s226 = scalar_select %p225, %s20, 0
      %s227 = smul.addr %s224, 32
      %s228 = sadd.s32 %s226, %s227
      %s229 = smul.addr %s228, 8
      %s230 = scalar_lea.vmem %s1, %s229
      %s231 = smul.u32 4, %s19
      %p232 = scmp.lt.s32.totalorder %s18, 1
      %s233 = scalar_select %p232, %s18, 1
      %p234 = scmp.lt.s32.totalorder %s231, 3
      %s235 = scalar_select %p234, %s231, 3
      %p236 = scmp.lt.s32.totalorder %s20, 0
      %s237 = scalar_select %p236, %s20, 0
      %s238 = smul.addr %s235, 2
      %s239 = sadd.s32 %s237, %s238
      %s240 = smul.addr %s233, 8
      %s241 = sadd.s32 %s239, %s240
      %s242 = smul.addr %s241, 8
      %s243 = scalar_lea.vmem %s2, %s242
      %s244 = smul.u32 4, %s19
      %v245 = vld [vmem:[%s230] sm:$0xff]
      %v246 = vld [vmem:[%s230 + $0x8] sm:$0xff]
      %v247 = vld [vmem:[%s230 + $0x10] sm:$0xff]
      %v248 = vld [vmem:[%s230 + $0x18] sm:$0xff]
      %v249 = vld [vmem:[%s230 + $0x20] sm:$0xff]
      %v250 = vld [vmem:[%s230 + $0x28] sm:$0xff]
      %v251 = vld [vmem:[%s230 + $0x30] sm:$0xff]
      %v252 = vld [vmem:[%s230 + $0x38] sm:$0xff]
      %v253 = vld [vmem:[%s230 + $0x40] sm:$0xff]
      %v254 = vld [vmem:[%s230 + $0x48] sm:$0xff]
      %v255 = vld [vmem:[%s230 + $0x50] sm:$0xff]
      %v256 = vld [vmem:[%s230 + $0x58] sm:$0xff]
      %v257 = vld [vmem:[%s230 + $0x60] sm:$0xff]
      %v258 = vld [vmem:[%s230 + $0x68] sm:$0xff]
      %v259 = vld [vmem:[%s230 + $0x70] sm:$0xff]
      %v260 = vld [vmem:[%s230 + $0x78] sm:$0xff]
      %v261 = vld [vmem:[%s230 + $0x80] sm:$0xff]
      %v262 = vld [vmem:[%s230 + $0x88] sm:$0xff]
      %v263 = vld [vmem:[%s230 + $0x90] sm:$0xff]
      %v264 = vld [vmem:[%s230 + $0x98] sm:$0xff]
      %v265 = vld [vmem:[%s230 + $0xa0] sm:$0xff]
      %v266 = vld [vmem:[%s230 + $0xa8] sm:$0xff]
      %v267 = vld [vmem:[%s230 + $0xb0] sm:$0xff]
      %v268 = vld [vmem:[%s230 + $0xb8] sm:$0xff]
      %v269 = vld [vmem:[%s230 + $0xc0] sm:$0xff]
      %v270 = vld [vmem:[%s230 + $0xc8] sm:$0xff]
      %v271 = vld [vmem:[%s230 + $0xd0] sm:$0xff]
      %v272 = vld [vmem:[%s230 + $0xd8] sm:$0xff]
      %v273 = vld [vmem:[%s230 + $0xe0] sm:$0xff]
      %v274 = vld [vmem:[%s230 + $0xe8] sm:$0xff]
      %v275 = vld [vmem:[%s230 + $0xf0] sm:$0xff]
      %v276 = vld [vmem:[%s230 + $0xf8] sm:$0xff]
      %v277 = vld [vmem:[%s221] sm:$0x1]
      %v278 = vlaneseq
      %v279 = vshrl.u32 %v278, 7
      %v280 = vsub.s32 0, %v279
      %v281 = vrot.slane %v277, %v280
      %v282 = vmul.f32 %v281, %v245
      %v283 = vmul.f32 %v281, %v246
      %v284 = vadd.f32 %v282, 0.0
      %v285 = vadd.f32 %v283, 0.0
      %v286 = vld [vmem:[%s221 + $0x1] sm:$0x1]
      %v287 = vlaneseq
      %v288 = vshrl.u32 %v287, 7
      %v289 = vsub.s32 0, %v288
      %v290 = vrot.slane %v286, %v289
      %v291 = vmul.f32 %v290, %v247
      %v292 = vmul.f32 %v290, %v248
      %v293 = vadd.f32 %v284, %v291
      %v294 = vadd.f32 %v285, %v292
      %v295 = vld [vmem:[%s221 + $0x2] sm:$0x1]
      %v296 = vlaneseq
      %v297 = vshrl.u32 %v296, 7
      %v298 = vsub.s32 0, %v297
      %v299 = vrot.slane %v295, %v298
      %v300 = vmul.f32 %v299, %v249
      %v301 = vmul.f32 %v299, %v250
      %v302 = vadd.f32 %v293, %v300
      %v303 = vadd.f32 %v294, %v301
      %v304 = vld [vmem:[%s221 + $0x3] sm:$0x1]
      %v305 = vlaneseq
      %v306 = vshrl.u32 %v305, 7
      %v307 = vsub.s32 0, %v306
      %v308 = vrot.slane %v304, %v307
      %v309 = vmul.f32 %v308, %v251
      %v310 = vmul.f32 %v308, %v252
      %v311 = vadd.f32 %v302, %v309
      %v312 = vadd.f32 %v303, %v310
      %v313 = vld [vmem:[%s221 + $0x4] sm:$0x1]
      %v314 = vlaneseq
      %v315 = vshrl.u32 %v314, 7
      %v316 = vsub.s32 0, %v315
      %v317 = vrot.slane %v313, %v316
      %v318 = vmul.f32 %v317, %v253
      %v319 = vmul.f32 %v317, %v254
      %v320 = vadd.f32 %v311, %v318
      %v321 = vadd.f32 %v312, %v319
      %v322 = vld [vmem:[%s221 + $0x5] sm:$0x1]
      %v323 = vlaneseq
      %v324 = vshrl.u32 %v323, 7
      %v325 = vsub.s32 0, %v324
      %v326 = vrot.slane %v322, %v325
      %v327 = vmul.f32 %v326, %v255
      %v328 = vmul.f32 %v326, %v256
      %v329 = vadd.f32 %v320, %v327
      %v330 = vadd.f32 %v321, %v328
      %v331 = vld [vmem:[%s221 + $0x6] sm:$0x1]
      %v332 = vlaneseq
      %v333 = vshrl.u32 %v332, 7
      %v334 = vsub.s32 0, %v333
      %v335 = vrot.slane %v331, %v334
      %v336 = vmul.f32 %v335, %v257
      %v337 = vmul.f32 %v335, %v258
      %v338 = vadd.f32 %v329, %v336
      %v339 = vadd.f32 %v330, %v337
      %v340 = vld [vmem:[%s221 + $0x7] sm:$0x1]
      %v341 = vlaneseq
      %v342 = vshrl.u32 %v341, 7
      %v343 = vsub.s32 0, %v342
      %v344 = vrot.slane %v340, %v343
      %v345 = vmul.f32 %v344, %v259
      %v346 = vmul.f32 %v344, %v260
      %v347 = vadd.f32 %v338, %v345
      %v348 = vadd.f32 %v339, %v346
      %v349 = vld [vmem:[%s221 + $0x8] sm:$0x1]
      %v350 = vlaneseq
      %v351 = vshrl.u32 %v350, 7
      %v352 = vsub.s32 0, %v351
      %v353 = vrot.slane %v349, %v352
      %v354 = vmul.f32 %v353, %v261
      %v355 = vmul.f32 %v353, %v262
      %v356 = vadd.f32 %v347, %v354
      %v357 = vadd.f32 %v348, %v355
      %v358 = vld [vmem:[%s221 + $0x9] sm:$0x1]
      %v359 = vlaneseq
      %v360 = vshrl.u32 %v359, 7
      %v361 = vsub.s32 0, %v360
      %v362 = vrot.slane %v358, %v361
      %v363 = vmul.f32 %v362, %v263
      %v364 = vmul.f32 %v362, %v264
      %v365 = vadd.f32 %v356, %v363
      %v366 = vadd.f32 %v357, %v364
      %v367 = vld [vmem:[%s221 + $0xa] sm:$0x1]
      %v368 = vlaneseq
      %v369 = vshrl.u32 %v368, 7
      %v370 = vsub.s32 0, %v369
      %v371 = vrot.slane %v367, %v370
      %v372 = vmul.f32 %v371, %v265
      %v373 = vmul.f32 %v371, %v266
      %v374 = vadd.f32 %v365, %v372
      %v375 = vadd.f32 %v366, %v373
      %v376 = vld [vmem:[%s221 + $0xb] sm:$0x1]
      %v377 = vlaneseq
      %v378 = vshrl.u32 %v377, 7
      %v379 = vsub.s32 0, %v378
      %v380 = vrot.slane %v376, %v379
      %v381 = vmul.f32 %v380, %v267
      %v382 = vmul.f32 %v380, %v268
      %v383 = vadd.f32 %v374, %v381
      %v384 = vadd.f32 %v375, %v382
      %v385 = vld [vmem:[%s221 + $0xc] sm:$0x1]
      %v386 = vlaneseq
      %v387 = vshrl.u32 %v386, 7
      %v388 = vsub.s32 0, %v387
      %v389 = vrot.slane %v385, %v388
      %v390 = vmul.f32 %v389, %v269
      %v391 = vmul.f32 %v389, %v270
      %v392 = vadd.f32 %v383, %v390
      %v393 = vadd.f32 %v384, %v391
      %v394 = vld [vmem:[%s221 + $0xd] sm:$0x1]
      %v395 = vlaneseq
      %v396 = vshrl.u32 %v395, 7
      %v397 = vsub.s32 0, %v396
      %v398 = vrot.slane %v394, %v397
      %v399 = vmul.f32 %v398, %v271
      %v400 = vmul.f32 %v398, %v272
      %v401 = vadd.f32 %v392, %v399
      %v402 = vadd.f32 %v393, %v400
      %v403 = vld [vmem:[%s221 + $0xe] sm:$0x1]
      %v404 = vlaneseq
      %v405 = vshrl.u32 %v404, 7
      %v406 = vsub.s32 0, %v405
      %v407 = vrot.slane %v403, %v406
      %v408 = vmul.f32 %v407, %v273
      %v409 = vmul.f32 %v407, %v274
      %v410 = vadd.f32 %v401, %v408
      %v411 = vadd.f32 %v402, %v409
      %v412 = vld [vmem:[%s221 + $0xf] sm:$0x1]
      %v413 = vlaneseq
      %v414 = vshrl.u32 %v413, 7
      %v415 = vsub.s32 0, %v414
      %v416 = vrot.slane %v412, %v415
      %v417 = vmul.f32 %v416, %v275
      %v418 = vmul.f32 %v416, %v276
      %v419 = vadd.f32 %v410, %v417
      %v420 = vadd.f32 %v411, %v418
      %vm421 = vcmask 64512
      %422 = vst.msk [vmem:[%s243] sm:$0xff] %vm421, %v419
      %423 = vst.msk [vmem:[%s243 + $0x8] sm:$0xff] %vm421, %v420
      %s424 = scalar_lea.vmem %s221, 16
      %v425 = vld [vmem:[%s424] sm:$0x1]
      %v426 = vlaneseq
      %v427 = vshrl.u32 %v426, 7
      %v428 = vsub.s32 0, %v427
      %v429 = vrot.slane %v425, %v428
      %v430 = vmul.f32 %v429, %v245
      %v431 = vmul.f32 %v429, %v246
      %v432 = vadd.f32 %v430, 0.0
      %v433 = vadd.f32 %v431, 0.0
      %v434 = vld [vmem:[%s424 + $0x1] sm:$0x1]
      %v435 = vlaneseq
      %v436 = vshrl.u32 %v435, 7
      %v437 = vsub.s32 0, %v436
      %v438 = vrot.slane %v434, %v437
      %v439 = vmul.f32 %v438, %v247
      %v440 = vmul.f32 %v438, %v248
      %v441 = vadd.f32 %v432, %v439
      %v442 = vadd.f32 %v433, %v440
      %v443 = vld [vmem:[%s424 + $0x2] sm:$0x1]
      %v444 = vlaneseq
      %v445 = vshrl.u32 %v444, 7
      %v446 = vsub.s32 0, %v445
      %v447 = vrot.slane %v443, %v446
      %v448 = vmul.f32 %v447, %v249
      %v449 = vmul.f32 %v447, %v250
      %v450 = vadd.f32 %v441, %v448
      %v451 = vadd.f32 %v442, %v449
      %v452 = vld [vmem:[%s424 + $0x3] sm:$0x1]
      %v453 = vlaneseq
      %v454 = vshrl.u32 %v453, 7
      %v455 = vsub.s32 0, %v454
      %v456 = vrot.slane %v452, %v455
      %v457 = vmul.f32 %v456, %v251
      %v458 = vmul.f32 %v456, %v252
      %v459 = vadd.f32 %v450, %v457
      %v460 = vadd.f32 %v451, %v458
      %v461 = vld [vmem:[%s424 + $0x4] sm:$0x1]
      %v462 = vlaneseq
      %v463 = vshrl.u32 %v462, 7
      %v464 = vsub.s32 0, %v463
      %v465 = vrot.slane %v461, %v464
      %v466 = vmul.f32 %v465, %v253
      %v467 = vmul.f32 %v465, %v254
      %v468 = vadd.f32 %v459, %v466
      %v469 = vadd.f32 %v460, %v467
      %v470 = vld [vmem:[%s424 + $0x5] sm:$0x1]
      %v471 = vlaneseq
      %v472 = vshrl.u32 %v471, 7
      %v473 = vsub.s32 0, %v472
      %v474 = vrot.slane %v470, %v473
      %v475 = vmul.f32 %v474, %v255
      %v476 = vmul.f32 %v474, %v256
      %v477 = vadd.f32 %v468, %v475
      %v478 = vadd.f32 %v469, %v476
      %v479 = vld [vmem:[%s424 + $0x6] sm:$0x1]
      %v480 = vlaneseq
      %v481 = vshrl.u32 %v480, 7
      %v482 = vsub.s32 0, %v481
      %v483 = vrot.slane %v479, %v482
      %v484 = vmul.f32 %v483, %v257
      %v485 = vmul.f32 %v483, %v258
      %v486 = vadd.f32 %v477, %v484
      %v487 = vadd.f32 %v478, %v485
      %v488 = vld [vmem:[%s424 + $0x7] sm:$0x1]
      %v489 = vlaneseq
      %v490 = vshrl.u32 %v489, 7
      %v491 = vsub.s32 0, %v490
      %v492 = vrot.slane %v488, %v491
      %v493 = vmul.f32 %v492, %v259
      %v494 = vmul.f32 %v492, %v260
      %v495 = vadd.f32 %v486, %v493
      %v496 = vadd.f32 %v487, %v494
      %v497 = vld [vmem:[%s424 + $0x8] sm:$0x1]
      %v498 = vlaneseq
      %v499 = vshrl.u32 %v498, 7
      %v500 = vsub.s32 0, %v499
      %v501 = vrot.slane %v497, %v500
      %v502 = vmul.f32 %v501, %v261
      %v503 = vmul.f32 %v501, %v262
      %v504 = vadd.f32 %v495, %v502
      %v505 = vadd.f32 %v496, %v503
      %v506 = vld [vmem:[%s424 + $0x9] sm:$0x1]
      %v507 = vlaneseq
      %v508 = vshrl.u32 %v507, 7
      %v509 = vsub.s32 0, %v508
      %v510 = vrot.slane %v506, %v509
      %v511 = vmul.f32 %v510, %v263
      %v512 = vmul.f32 %v510, %v264
      %v513 = vadd.f32 %v504, %v511
      %v514 = vadd.f32 %v505, %v512
      %v515 = vld [vmem:[%s424 + $0xa] sm:$0x1]
      %v516 = vlaneseq
      %v517 = vshrl.u32 %v516, 7
      %v518 = vsub.s32 0, %v517
      %v519 = vrot.slane %v515, %v518
      %v520 = vmul.f32 %v519, %v265
      %v521 = vmul.f32 %v519, %v266
      %v522 = vadd.f32 %v513, %v520
      %v523 = vadd.f32 %v514, %v521
      %v524 = vld [vmem:[%s424 + $0xb] sm:$0x1]
      %v525 = vlaneseq
      %v526 = vshrl.u32 %v525, 7
      %v527 = vsub.s32 0, %v526
      %v528 = vrot.slane %v524, %v527
      %v529 = vmul.f32 %v528, %v267
      %v530 = vmul.f32 %v528, %v268
      %v531 = vadd.f32 %v522, %v529
      %v532 = vadd.f32 %v523, %v530
      %v533 = vld [vmem:[%s424 + $0xc] sm:$0x1]
      %v534 = vlaneseq
      %v535 = vshrl.u32 %v534, 7
      %v536 = vsub.s32 0, %v535
      %v537 = vrot.slane %v533, %v536
      %v538 = vmul.f32 %v537, %v269
      %v539 = vmul.f32 %v537, %v270
      %v540 = vadd.f32 %v531, %v538
      %v541 = vadd.f32 %v532, %v539
      %v542 = vld [vmem:[%s424 + $0xd] sm:$0x1]
      %v543 = vlaneseq
      %v544 = vshrl.u32 %v543, 7
      %v545 = vsub.s32 0, %v544
      %v546 = vrot.slane %v542, %v545
      %v547 = vmul.f32 %v546, %v271
      %v548 = vmul.f32 %v546, %v272
      %v549 = vadd.f32 %v540, %v547
      %v550 = vadd.f32 %v541, %v548
      %v551 = vld [vmem:[%s424 + $0xe] sm:$0x1]
      %v552 = vlaneseq
      %v553 = vshrl.u32 %v552, 7
      %v554 = vsub.s32 0, %v553
      %v555 = vrot.slane %v551, %v554
      %v556 = vmul.f32 %v555, %v273
      %v557 = vmul.f32 %v555, %v274
      %v558 = vadd.f32 %v549, %v556
      %v559 = vadd.f32 %v550, %v557
      %v560 = vld [vmem:[%s424 + $0xf] sm:$0x1]
      %v561 = vlaneseq
      %v562 = vshrl.u32 %v561, 7
      %v563 = vsub.s32 0, %v562
      %v564 = vrot.slane %v560, %v563
      %v565 = vmul.f32 %v564, %v275
      %v566 = vmul.f32 %v564, %v276
      %v567 = vadd.f32 %v558, %v565
      %v568 = vadd.f32 %v559, %v566
      %s569 = scalar_lea.vmem %s243, 16
      %570 = vst.msk [vmem:[%s569] sm:$0xff] %vm421, %v567
      %571 = vst.msk [vmem:[%s569 + $0x8] sm:$0xff] %vm421, %v568
      %s572 = scalar_lea.vmem %s221, 32
      %v573 = vld [vmem:[%s572] sm:$0x1]
      %v574 = vlaneseq
      %v575 = vshrl.u32 %v574, 7
      %v576 = vsub.s32 0, %v575
      %v577 = vrot.slane %v573, %v576
      %v578 = vmul.f32 %v577, %v245
      %v579 = vmul.f32 %v577, %v246
      %v580 = vadd.f32 %v578, 0.0
      %v581 = vadd.f32 %v579, 0.0
      %v582 = vld [vmem:[%s572 + $0x1] sm:$0x1]
      %v583 = vlaneseq
      %v584 = vshrl.u32 %v583, 7
      %v585 = vsub.s32 0, %v584
      %v586 = vrot.slane %v582, %v585
      %v587 = vmul.f32 %v586, %v247
      %v588 = vmul.f32 %v586, %v248
      %v589 = vadd.f32 %v580, %v587
      %v590 = vadd.f32 %v581, %v588
      %v591 = vld [vmem:[%s572 + $0x2] sm:$0x1]
      %v592 = vlaneseq
      %v593 = vshrl.u32 %v592, 7
      %v594 = vsub.s32 0, %v593
      %v595 = vrot.slane %v591, %v594
      %v596 = vmul.f32 %v595, %v249
      %v597 = vmul.f32 %v595, %v250
      %v598 = vadd.f32 %v589, %v596
      %v599 = vadd.f32 %v590, %v597
      %v600 = vld [vmem:[%s572 + $0x3] sm:$0x1]
      %v601 = vlaneseq
      %v602 = vshrl.u32 %v601, 7
      %v603 = vsub.s32 0, %v602
      %v604 = vrot.slane %v600, %v603
      %v605 = vmul.f32 %v604, %v251
      %v606 = vmul.f32 %v604, %v252
      %v607 = vadd.f32 %v598, %v605
      %v608 = vadd.f32 %v599, %v606
      %v609 = vld [vmem:[%s572 + $0x4] sm:$0x1]
      %v610 = vlaneseq
      %v611 = vshrl.u32 %v610, 7
      %v612 = vsub.s32 0, %v611
      %v613 = vrot.slane %v609, %v612
      %v614 = vmul.f32 %v613, %v253
      %v615 = vmul.f32 %v613, %v254
      %v616 = vadd.f32 %v607, %v614
      %v617 = vadd.f32 %v608, %v615
      %v618 = vld [vmem:[%s572 + $0x5] sm:$0x1]
      %v619 = vlaneseq
      %v620 = vshrl.u32 %v619, 7
      %v621 = vsub.s32 0, %v620
      %v622 = vrot.slane %v618, %v621
      %v623 = vmul.f32 %v622, %v255
      %v624 = vmul.f32 %v622, %v256
      %v625 = vadd.f32 %v616, %v623
      %v626 = vadd.f32 %v617, %v624
      %v627 = vld [vmem:[%s572 + $0x6] sm:$0x1]
      %v628 = vlaneseq
      %v629 = vshrl.u32 %v628, 7
      %v630 = vsub.s32 0, %v629
      %v631 = vrot.slane %v627, %v630
      %v632 = vmul.f32 %v631, %v257
      %v633 = vmul.f32 %v631, %v258
      %v634 = vadd.f32 %v625, %v632
      %v635 = vadd.f32 %v626, %v633
      %v636 = vld [vmem:[%s572 + $0x7] sm:$0x1]
      %v637 = vlaneseq
      %v638 = vshrl.u32 %v637, 7
      %v639 = vsub.s32 0, %v638
      %v640 = vrot.slane %v636, %v639
      %v641 = vmul.f32 %v640, %v259
      %v642 = vmul.f32 %v640, %v260
      %v643 = vadd.f32 %v634, %v641
      %v644 = vadd.f32 %v635, %v642
      %v645 = vld [vmem:[%s572 + $0x8] sm:$0x1]
      %v646 = vlaneseq
      %v647 = vshrl.u32 %v646, 7
      %v648 = vsub.s32 0, %v647
      %v649 = vrot.slane %v645, %v648
      %v650 = vmul.f32 %v649, %v261
      %v651 = vmul.f32 %v649, %v262
      %v652 = vadd.f32 %v643, %v650
      %v653 = vadd.f32 %v644, %v651
      %v654 = vld [vmem:[%s572 + $0x9] sm:$0x1]
      %v655 = vlaneseq
      %v656 = vshrl.u32 %v655, 7
      %v657 = vsub.s32 0, %v656
      %v658 = vrot.slane %v654, %v657
      %v659 = vmul.f32 %v658, %v263
      %v660 = vmul.f32 %v658, %v264
      %v661 = vadd.f32 %v652, %v659
      %v662 = vadd.f32 %v653, %v660
      %v663 = vld [vmem:[%s572 + $0xa] sm:$0x1]
      %v664 = vlaneseq
      %v665 = vshrl.u32 %v664, 7
      %v666 = vsub.s32 0, %v665
      %v667 = vrot.slane %v663, %v666
      %v668 = vmul.f32 %v667, %v265
      %v669 = vmul.f32 %v667, %v266
      %v670 = vadd.f32 %v661, %v668
      %v671 = vadd.f32 %v662, %v669
      %v672 = vld [vmem:[%s572 + $0xb] sm:$0x1]
      %v673 = vlaneseq
      %v674 = vshrl.u32 %v673, 7
      %v675 = vsub.s32 0, %v674
      %v676 = vrot.slane %v672, %v675
      %v677 = vmul.f32 %v676, %v267
      %v678 = vmul.f32 %v676, %v268
      %v679 = vadd.f32 %v670, %v677
      %v680 = vadd.f32 %v671, %v678
      %v681 = vld [vmem:[%s572 + $0xc] sm:$0x1]
      %v682 = vlaneseq
      %v683 = vshrl.u32 %v682, 7
      %v684 = vsub.s32 0, %v683
      %v685 = vrot.slane %v681, %v684
      %v686 = vmul.f32 %v685, %v269
      %v687 = vmul.f32 %v685, %v270
      %v688 = vadd.f32 %v679, %v686
      %v689 = vadd.f32 %v680, %v687
      %v690 = vld [vmem:[%s572 + $0xd] sm:$0x1]
      %v691 = vlaneseq
      %v692 = vshrl.u32 %v691, 7
      %v693 = vsub.s32 0, %v692
      %v694 = vrot.slane %v690, %v693
      %v695 = vmul.f32 %v694, %v271
      %v696 = vmul.f32 %v694, %v272
      %v697 = vadd.f32 %v688, %v695
      %v698 = vadd.f32 %v689, %v696
      %v699 = vld [vmem:[%s572 + $0xe] sm:$0x1]
      %v700 = vlaneseq
      %v701 = vshrl.u32 %v700, 7
      %v702 = vsub.s32 0, %v701
      %v703 = vrot.slane %v699, %v702
      %v704 = vmul.f32 %v703, %v273
      %v705 = vmul.f32 %v703, %v274
      %v706 = vadd.f32 %v697, %v704
      %v707 = vadd.f32 %v698, %v705
      %v708 = vld [vmem:[%s572 + $0xf] sm:$0x1]
      %v709 = vlaneseq
      %v710 = vshrl.u32 %v709, 7
      %v711 = vsub.s32 0, %v710
      %v712 = vrot.slane %v708, %v711
      %v713 = vmul.f32 %v712, %v275
      %v714 = vmul.f32 %v712, %v276
      %v715 = vadd.f32 %v706, %v713
      %v716 = vadd.f32 %v707, %v714
      %s717 = scalar_lea.vmem %s243, 32
      %718 = vst.msk [vmem:[%s717] sm:$0xff] %vm421, %v715
      %719 = vst.msk [vmem:[%s717 + $0x8] sm:$0xff] %vm421, %v716
      %s720 = scalar_lea.vmem %s221, 48
      %v721 = vld [vmem:[%s720] sm:$0x1]
      %v722 = vlaneseq
      %v723 = vshrl.u32 %v722, 7
      %v724 = vsub.s32 0, %v723
      %v725 = vrot.slane %v721, %v724
      %v726 = vmul.f32 %v725, %v245
      %v727 = vmul.f32 %v725, %v246
      %v728 = vadd.f32 %v726, 0.0
      %v729 = vadd.f32 %v727, 0.0
      %v730 = vld [vmem:[%s720 + $0x1] sm:$0x1]
      %v731 = vlaneseq
      %v732 = vshrl.u32 %v731, 7
      %v733 = vsub.s32 0, %v732
      %v734 = vrot.slane %v730, %v733
      %v735 = vmul.f32 %v734, %v247
      %v736 = vmul.f32 %v734, %v248
      %v737 = vadd.f32 %v728, %v735
      %v738 = vadd.f32 %v729, %v736
      %v739 = vld [vmem:[%s720 + $0x2] sm:$0x1]
      %v740 = vlaneseq
      %v741 = vshrl.u32 %v740, 7
      %v742 = vsub.s32 0, %v741
      %v743 = vrot.slane %v739, %v742
      %v744 = vmul.f32 %v743, %v249
      %v745 = vmul.f32 %v743, %v250
      %v746 = vadd.f32 %v737, %v744
      %v747 = vadd.f32 %v738, %v745
      %v748 = vld [vmem:[%s720 + $0x3] sm:$0x1]
      %v749 = vlaneseq
      %v750 = vshrl.u32 %v749, 7
      %v751 = vsub.s32 0, %v750
      %v752 = vrot.slane %v748, %v751
      %v753 = vmul.f32 %v752, %v251
      %v754 = vmul.f32 %v752, %v252
      %v755 = vadd.f32 %v746, %v753
      %v756 = vadd.f32 %v747, %v754
      %v757 = vld [vmem:[%s720 + $0x4] sm:$0x1]
      %v758 = vlaneseq
      %v759 = vshrl.u32 %v758, 7
      %v760 = vsub.s32 0, %v759
      %v761 = vrot.slane %v757, %v760
      %v762 = vmul.f32 %v761, %v253
      %v763 = vmul.f32 %v761, %v254
      %v764 = vadd.f32 %v755, %v762
      %v765 = vadd.f32 %v756, %v763
      %v766 = vld [vmem:[%s720 + $0x5] sm:$0x1]
      %v767 = vlaneseq
      %v768 = vshrl.u32 %v767, 7
      %v769 = vsub.s32 0, %v768
      %v770 = vrot.slane %v766, %v769
      %v771 = vmul.f32 %v770, %v255
      %v772 = vmul.f32 %v770, %v256
      %v773 = vadd.f32 %v764, %v771
      %v774 = vadd.f32 %v765, %v772
      %v775 = vld [vmem:[%s720 + $0x6] sm:$0x1]
      %v776 = vlaneseq
      %v777 = vshrl.u32 %v776, 7
      %v778 = vsub.s32 0, %v777
      %v779 = vrot.slane %v775, %v778
      %v780 = vmul.f32 %v779, %v257
      %v781 = vmul.f32 %v779, %v258
      %v782 = vadd.f32 %v773, %v780
      %v783 = vadd.f32 %v774, %v781
      %v784 = vld [vmem:[%s720 + $0x7] sm:$0x1]
      %v785 = vlaneseq
      %v786 = vshrl.u32 %v785, 7
      %v787 = vsub.s32 0, %v786
      %v788 = vrot.slane %v784, %v787
      %v789 = vmul.f32 %v788, %v259
      %v790 = vmul.f32 %v788, %v260
      %v791 = vadd.f32 %v782, %v789
      %v792 = vadd.f32 %v783, %v790
      %v793 = vld [vmem:[%s720 + $0x8] sm:$0x1]
      %v794 = vlaneseq
      %v795 = vshrl.u32 %v794, 7
      %v796 = vsub.s32 0, %v795
      %v797 = vrot.slane %v793, %v796
      %v798 = vmul.f32 %v797, %v261
      %v799 = vmul.f32 %v797, %v262
      %v800 = vadd.f32 %v791, %v798
      %v801 = vadd.f32 %v792, %v799
      %v802 = vld [vmem:[%s720 + $0x9] sm:$0x1]
      %v803 = vlaneseq
      %v804 = vshrl.u32 %v803, 7
      %v805 = vsub.s32 0, %v804
      %v806 = vrot.slane %v802, %v805
      %v807 = vmul.f32 %v806, %v263
      %v808 = vmul.f32 %v806, %v264
      %v809 = vadd.f32 %v800, %v807
      %v810 = vadd.f32 %v801, %v808
      %v811 = vld [vmem:[%s720 + $0xa] sm:$0x1]
      %v812 = vlaneseq
      %v813 = vshrl.u32 %v812, 7
      %v814 = vsub.s32 0, %v813
      %v815 = vrot.slane %v811, %v814
      %v816 = vmul.f32 %v815, %v265
      %v817 = vmul.f32 %v815, %v266
      %v818 = vadd.f32 %v809, %v816
      %v819 = vadd.f32 %v810, %v817
      %v820 = vld [vmem:[%s720 + $0xb] sm:$0x1]
      %v821 = vlaneseq
      %v822 = vshrl.u32 %v821, 7
      %v823 = vsub.s32 0, %v822
      %v824 = vrot.slane %v820, %v823
      %v825 = vmul.f32 %v824, %v267
      %v826 = vmul.f32 %v824, %v268
      %v827 = vadd.f32 %v818, %v825
      %v828 = vadd.f32 %v819, %v826
      %v829 = vld [vmem:[%s720 + $0xc] sm:$0x1]
      %v830 = vlaneseq
      %v831 = vshrl.u32 %v830, 7
      %v832 = vsub.s32 0, %v831
      %v833 = vrot.slane %v829, %v832
      %v834 = vmul.f32 %v833, %v269
      %v835 = vmul.f32 %v833, %v270
      %v836 = vadd.f32 %v827, %v834
      %v837 = vadd.f32 %v828, %v835
      %v838 = vld [vmem:[%s720 + $0xd] sm:$0x1]
      %v839 = vlaneseq
      %v840 = vshrl.u32 %v839, 7
      %v841 = vsub.s32 0, %v840
      %v842 = vrot.slane %v838, %v841
      %v843 = vmul.f32 %v842, %v271
      %v844 = vmul.f32 %v842, %v272
      %v845 = vadd.f32 %v836, %v843
      %v846 = vadd.f32 %v837, %v844
      %v847 = vld [vmem:[%s720 + $0xe] sm:$0x1]
      %v848 = vlaneseq
      %v849 = vshrl.u32 %v848, 7
      %v850 = vsub.s32 0, %v849
      %v851 = vrot.slane %v847, %v850
      %v852 = vmul.f32 %v851, %v273
      %v853 = vmul.f32 %v851, %v274
      %v854 = vadd.f32 %v845, %v852
      %v855 = vadd.f32 %v846, %v853
      %v856 = vld [vmem:[%s720 + $0xf] sm:$0x1]
      %v857 = vlaneseq
      %v858 = vshrl.u32 %v857, 7
      %v859 = vsub.s32 0, %v858
      %v860 = vrot.slane %v856, %v859
      %v861 = vmul.f32 %v860, %v275
      %v862 = vmul.f32 %v860, %v276
      %v863 = vadd.f32 %v854, %v861
      %v864 = vadd.f32 %v855, %v862
      %s865 = scalar_lea.vmem %s243, 48
      %866 = vst.msk [vmem:[%s865] sm:$0xff] %vm421, %v863
      %867 = vst.msk [vmem:[%s865 + $0x8] sm:$0xff] %vm421, %v864
      %s868 = smul.u32 4, %s19
      %p869 = scmp.lt.s32.totalorder %s18, 1
      %s870 = scalar_select %p869, %s18, 1
      %p871 = scmp.lt.s32.totalorder %s868, 3
      %s872 = scalar_select %p871, %s868, 3
      %p873 = scmp.lt.s32.totalorder %s20, 0
      %s874 = scalar_select %p873, %s20, 0
      %s875 = smul.addr %s872, 2
      %s876 = sadd.s32 %s874, %s875
      %s877 = smul.addr %s870, 8
      %s878 = sadd.s32 %s876, %s877
      %s879 = smul.addr %s878, 8
      %s880 = scalar_lea.vmem %s2, %s879
      // Predicated region
      $region29: #{tpu_custom_call.1} parent=27 // pred_check
        %p881 = pneg %p112
      $region30: #{tpu_custom_call.1} parent=27 // pred_check_branch
        %883 = sbr.rel (%p881) target = $region32
      $region31: #{tpu_custom_call.1} parent=27 // pred_region
        %s884 = smul.u32 4, %s19
      $region32: #{tpu_custom_call.1} parent=27 // pred_fallthru
        _
    $region28: #{tpu_custom_call.1} parent=5 // pred_fallthru
      _
    %p885 = scmp.le.s32.totalorder 2, %s8
    // Predicated region
    $region33: #{tpu_custom_call.1} parent=5 // pred_check
      %p886 = pneg %p885
    $region34: #{tpu_custom_call.1} parent=5 // pred_check_branch
      %888 = sbr.rel (%p886) target = $region36
    $region35: #{tpu_custom_call.1} parent=5 // pred_region
      %s889 = ssub.s32 %s8, 2
      // Predicated region
      $region37: #{tpu_custom_call.1} parent=35 // pred_check
        %p890 = pneg %p118
      $region38: #{tpu_custom_call.1} parent=35 // pred_check_branch
        %892 = sbr.rel (%p890) target = $region40
      $region39: #{tpu_custom_call.1} parent=35 // pred_region
        %s893 = smul.u32 4, %s22
        %p894 = scmp.lt.s32.totalorder %s21, 1
        %s895 = scalar_select %p894, %s21, 1
        %p896 = scmp.lt.s32.totalorder %s893, 3
        %s897 = scalar_select %p896, %s893, 3
        %p898 = scmp.lt.s32.totalorder %s23, 0
        %s899 = scalar_select %p898, %s23, 0
        %s900 = smul.addr %s897, 2
        %s901 = sadd.s32 %s899, %s900
        %s902 = smul.addr %s895, 8
        %s903 = sadd.s32 %s901, %s902
        %s904 = smul.addr %s903, 8
        %s905 = scalar_lea.vmem %s2, %s904
      $region40: #{tpu_custom_call.1} parent=35 // pred_fallthru
        _
    $region36: #{tpu_custom_call.1} parent=5 // pred_fallthru
      _
  $region6: #{tpu_custom_call.1} parent=0 // loop_footer
    %s12 = sadd.s32 1, %s8
  $region7: #{tpu_custom_call.1} parent=0 // loop_footer_branch
    %7 = sbr.rel target = $region3
  $region8: #{tpu_custom_call.1} parent=0 // loop_exit
    _

</llo_original>
